<compile_context>
chip_gen: v5e
topology: v5e:2x2
jax: 0.10.0
libtpu: 0.0.40
codegen_flags: <defaults>
</compile_context>

<pallas_src>
import functools

import jax
import jax.numpy as jnp
import numpy as np
from jax.experimental import pallas as pl
from jax.experimental.pallas import tpu as pltpu


def _round_up(x: int, m: int) -> int:
    return ((x + m - 1) // m) * m


def _pcnn_kernel(x_ref, bnd_ref, cw_ref, cb_ref, lw_ref, o_ref, *, Bblk, Lp):
    """PCNN hot path for a block of Bblk examples.

    x_ref  : (Bblk, Lh, C)  bf16  merged embeddings, halo-padded along seq
    bnd_ref: (Bblk, 1, 8)   i32   [s0,e0,s1,e1,s2,e2,0,0] segment boundaries
    cw_ref : (W, C, U)      bf16  conv weight, tap-major
    cb_ref : (1, U)         f32   conv bias
    lw_ref : (3, U, Npad)   bf16  linear weight row blocks, 128-padded columns
    o_ref  : (Bblk, Npad)   f32   output logits (lane-dense slab)
    """
    W, C, U = cw_ref.shape

    x = x_ref[...]                                          # (Bblk, Lh, C) bf16

    # --- Conv1d ('same') as W shifted-tap matmuls, f32 accumulation (MXU). ---
    y = jnp.zeros((Bblk * Lp, U), jnp.float32)
    for w in range(W):                                      # static unroll
        xw = x[:, w:w + Lp, :].reshape(Bblk * Lp, C)
        y = y + jnp.dot(xw, cw_ref[w], preferred_element_type=jnp.float32)
    y = (y + cb_ref[...]).reshape(Bblk, Lp, U)

    # --- Piecewise max pooling from per-example segment boundaries (iota
    #     masks).  Matches torch max(y*mask) -> ReLU: out-of-segment positions
    #     contribute 0, harmless because ReLU follows. ---
    t_idx = jax.lax.broadcasted_iota(jnp.int32, (Bblk, Lp, U), 1)
    acc = jnp.zeros(o_ref.shape, jnp.float32)
    for s in range(3):                                      # static unroll
        start = bnd_ref[:, :, 2 * s:2 * s + 1]              # (Bblk, 1, 1)
        end = bnd_ref[:, :, 2 * s + 1:2 * s + 2]            # (Bblk, 1, 1)
        seg = (t_idx >= start) & (t_idx < end)
        pooled = jnp.max(jnp.where(seg, y, 0.0), axis=1)    # (Bblk, U) f32
        h = jnp.maximum(pooled, 0.0).astype(lw_ref.dtype)
        # Row-blocked projection (replaces the 3U lane concat).
        acc = acc + jnp.dot(h, lw_ref[s], preferred_element_type=jnp.float32)

    o_ref[...] = acc


def _choose_bblk(B, Lp, per_example_bytes, budget_bytes=8 << 20):
    """Batch block size.

    One grid step when the (padded) batch fits a conservative VMEM budget —
    preferred on single-TC v5e/v6e and safe on v7x (64 MiB physical VMEM,
    32 MiB default scoped limit).  Otherwise multiple-of-8 blocks targeting
    ~512-row conv M tiles (fills the 256-row MXU on v6e/v7x; v5e just makes
    extra 128-row passes).
    """
    if B <= 0:
        return 1

    def fits(n):
        return 2 * n * per_example_bytes <= budget_bytes    # double-buffered

    if fits(B):
        return B
    bblk = max(8, ((512 // max(Lp, 1)) // 8) * 8)
    while bblk > 8 and not fits(bblk):
        bblk -= 8
    return bblk


def pcnn_forward(sentence_input, entity_markers, pcnn_mask, params):
    """Plain-JAX glue (embedding gathers, padding, weight prep) + kernel."""
    word_emb = params["word_emb"]     # (V, E)
    pos_emb0 = params["pos_emb0"]     # (2L+1, P)
    pos_emb1 = params["pos_emb1"]     # (2L+1, P)
    conv_w = params["conv_w"]         # (U, C, W)   torch Conv1d layout
    conv_b = params["conv_b"]         # (U,)
    lin_w = params["lin_w"]           # (n_out, 3U) torch Linear layout

    B, L = sentence_input.shape
    U, C, W = conv_w.shape
    n_out = lin_w.shape[0]
    if W % 2 != 1:
        raise ValueError("window_size must be odd for 'same' conv length")
    pad = W // 2

    # Embedding lookups + concat (dim=2); dropout == identity (eval).
    we = jnp.take(word_emb, sentence_input, axis=0)            # (B, L, E)
    p0 = jnp.take(pos_emb0, entity_markers[:, 0, :], axis=0)   # (B, L, P)
    p1 = jnp.take(pos_emb1, entity_markers[:, 1, :], axis=0)   # (B, L, P)
    merged = jnp.concatenate([we, p0, p1], axis=2).astype(jnp.bfloat16)  # (B,L,C)

    # Sequence padding: L -> multiple of 8 (sublane-aligned in-kernel reshape)
    # plus a conv halo of `pad` zeros in front (trailing pad absorbs the rest).
    Lp = _round_up(L, 8)
    Lh = _round_up(Lp + 2 * pad, 8)
    x = jnp.pad(merged, ((0, 0), (pad, Lh - L - pad), (0, 0)))  # (B, Lh, C)

    # Piecewise mask -> per-example segment boundaries [start, end) x 3.
    # PCNN masks are contiguous 0/1 runs (left / middle / right of the two
    # entities, padding excluded), so boundaries capture them exactly; empty
    # segments become [0, 0) and pool to 0, matching torch max(y*0) -> relu.
    m = pcnn_mask.astype(jnp.float32)                           # (B, 3, L)
    cnt = jnp.sum(m, axis=-1).astype(jnp.int32)                 # (B, 3)
    first = jnp.argmax(m, axis=-1).astype(jnp.int32)            # (B, 3)
    start = jnp.where(cnt > 0, first, 0)
    end = start + cnt
    bounds = jnp.stack([start, end], axis=-1).reshape(B, 6)     # [s0,e0,...]
    bounds = jnp.pad(bounds, ((0, 0), (0, 2))).reshape(B, 1, 8).astype(jnp.int32)

    # Weight layouts for the kernel.
    cw = jnp.transpose(conv_w, (2, 1, 0)).astype(jnp.bfloat16)      # (W, C, U)
    cb = conv_b.reshape(1, U).astype(jnp.float32)
    Npad = _round_up(n_out, 128)                                    # lane-dense
    lwt = jnp.transpose(lin_w).astype(jnp.bfloat16)                 # (3U, n_out)
    lw = jnp.pad(lwt, ((0, 0), (0, Npad - n_out))).reshape(3, U, Npad)

    # Batch blocking (generation-aware: single step when VMEM allows).
    per_ex_bytes = Lh * max(C, 128) * 2 + Lp * max(U, 128) * 4
    Bblk = _choose_bblk(B, Lp, per_ex_bytes)
    n_steps = -(-B // Bblk)
    Bp = n_steps * Bblk
    if Bp != B:
        pb = Bp - B
        x = jnp.pad(x, ((0, pb), (0, 0), (0, 0)))
        bounds = jnp.pad(bounds, ((0, pb), (0, 0), (0, 0)))  # empty segments

    kernel = functools.partial(_pcnn_kernel, Bblk=Bblk, Lp=Lp)

    flops = int(2 * Bp * Lp * W * C * U + 2 * Bp * 3 * U * Npad
                + 5 * Bp * 3 * Lp * U)
    bytes_accessed = int(x.size * 2 + bounds.size * 4 + cw.size * 2
                         + cb.size * 4 + lw.size * 2 + Bp * Npad * 4)

    out = pl.pallas_call(
        kernel,
        out_shape=jax.ShapeDtypeStruct((Bp, Npad), jnp.float32),
        grid_spec=pltpu.PrefetchScalarGridSpec(
            num_scalar_prefetch=0,
            grid=(n_steps,),
            in_specs=[
                pl.BlockSpec((Bblk, Lh, C), lambda b: (b, 0, 0)),
                pl.BlockSpec((Bblk, 1, 8), lambda b: (b, 0, 0)),
                pl.BlockSpec((W, C, U), lambda b: (0, 0, 0)),
                pl.BlockSpec((1, U), lambda b: (0, 0)),
                pl.BlockSpec((3, U, Npad), lambda b: (0, 0, 0)),
            ],
            out_specs=pl.BlockSpec((Bblk, Npad), lambda b: (b, 0)),
        ),
        compiler_params=pltpu.CompilerParams(
            dimension_semantics=("parallel",)),
        cost_estimate=pl.CostEstimate(
            flops=flops, transcendentals=0, bytes_accessed=bytes_accessed),
    )(x, bounds, cw, cb, lw)
    return out[:B, :n_out]


def pcnn_reference(sentence_input, entity_markers, pcnn_mask, params):
    """Pure-JAX f32 reference for correctness checking."""
    word_emb = params["word_emb"]
    pos_emb0 = params["pos_emb0"]
    pos_emb1 = params["pos_emb1"]
    conv_w = params["conv_w"]
    conv_b = params["conv_b"]
    lin_w = params["lin_w"]
    U, C, W = conv_w.shape
    pad = W // 2

    we = jnp.take(word_emb, sentence_input, axis=0)
    p0 = jnp.take(pos_emb0, entity_markers[:, 0, :], axis=0)
    p1 = jnp.take(pos_emb1, entity_markers[:, 1, :], axis=0)
    merged = jnp.concatenate([we, p0, p1], axis=2)             # (B, L, C)
    x = jnp.transpose(merged, (0, 2, 1))                       # (B, C, L)
    y = jax.lax.conv_general_dilated(
        x, conv_w, window_strides=(1,), padding=[(pad, pad)],
        dimension_numbers=("NCH", "OIH", "NCH")) + conv_b[None, :, None]
    segs = []
    for s in range(3):
        segs.append(jnp.max(y * pcnn_mask[:, s][:, None, :], axis=2))
    h = jnp.maximum(jnp.concatenate(segs, axis=1), 0.0)
    return h @ lin_w.T


if __name__ == "__main__":
    # Hyper-parameters implied by the module (small, deterministic).
    B = 16                # batch
    L = 16                # max_sent_len
    V = 50                # vocab size
    E = 32                # word embedding dim
    P = 8                 # position_emb
    U = 32                # units1
    W = 3                 # window_size (odd -> 'same' conv length)
    n_out = 8
    C = E + 2 * P

    key = jax.random.PRNGKey(0)
    ks = jax.random.split(key, 10)

    word_emb = jax.random.normal(ks[0], (V, E), jnp.float32) * 0.1
    word_emb = word_emb.at[0].set(0.0)                      # padding_idx=0
    pos_emb0 = jax.random.normal(ks[1], (2 * L + 1, P), jnp.float32) * 0.1
    pos_emb0 = pos_emb0.at[0].set(0.0)
    pos_emb1 = jax.random.normal(ks[2], (2 * L + 1, P), jnp.float32) * 0.1
    pos_emb1 = pos_emb1.at[0].set(0.0)

    # Xavier-uniform-like deterministic init for conv / linear weights.
    fan_conv = C * W + U * W
    lim_c = float(np.sqrt(6.0 / fan_conv))
    conv_w = jax.random.uniform(ks[3], (U, C, W), jnp.float32, -lim_c, lim_c)
    conv_b = jax.random.normal(ks[4], (U,), jnp.float32) * 0.01
    lim_l = float(np.sqrt(6.0 / (3 * U + n_out)))
    lin_w = jax.random.uniform(ks[5], (n_out, 3 * U), jnp.float32, -lim_l, lim_l)

    params = dict(word_emb=word_emb, pos_emb0=pos_emb0, pos_emb1=pos_emb1,
                  conv_w=conv_w, conv_b=conv_b, lin_w=lin_w)

    # Deterministic inputs.
    sentence_input = jax.random.randint(ks[6], (B, L), 0, V, jnp.int32)
    entity_markers = jax.random.randint(ks[7], (B, 2, L), 0, 2 * L + 1, jnp.int32)

    # Piecewise masks: split sequence into three contiguous segments.
    t = jnp.arange(L)
    m_left = (t < L // 3).astype(jnp.float32)
    m_mid = ((t >= L // 3) & (t < 2 * L // 3)).astype(jnp.float32)
    m_right = (t >= 2 * L // 3).astype(jnp.float32)
    pcnn_mask = jnp.broadcast_to(
        jnp.stack([m_left, m_mid, m_right], axis=0)[None], (B, 3, L))

    out = pcnn_forward(sentence_input, entity_markers, pcnn_mask, params)
    out = jax.block_until_ready(out)

    ref = pcnn_reference(sentence_input, entity_markers, pcnn_mask, params)
    # bf16 MXU inputs (f32 accumulation) vs f32 reference -> bf16 tolerance.
    np.testing.assert_allclose(np.asarray(out), np.asarray(ref),
                               rtol=2e-2, atol=5e-3)
    print("KERNEL_OK")
</pallas_src>

<mosaic_0001>
module attributes {stable_mosaic.version = 11 : i64} {
  func.func @_pcnn_kernel(%arg0: i32, %arg1: memref<16x24x48xbf16, #tpu.memory_space<vmem>>, %arg2: memref<16x1x8xi32, #tpu.memory_space<vmem>>, %arg3: memref<3x48x32xbf16, #tpu.memory_space<vmem>>, %arg4: memref<1x32xf32, #tpu.memory_space<vmem>>, %arg5: memref<3x32x128xbf16, #tpu.memory_space<vmem>>, %arg6: memref<16x128xf32, #tpu.memory_space<vmem>>) attributes {dimension_semantics = [#tpu.dimension_semantics<parallel>], iteration_bounds = array<i64: 1>, scalar_prefetch = 0 : i64, scratch_operands = 0 : i64, tpu.core_type = #tpu.core_type<tc>, window_params = [{transform_indices = @transform_0, window_bounds = array<i64: 16, 24, 48>}, {transform_indices = @transform_1, window_bounds = array<i64: 16, 1, 8>}, {pipeline_mode = #tpu.pipeline_mode<synchronous>, transform_indices = @transform_2, window_bounds = array<i64: 3, 48, 32>}, {pipeline_mode = #tpu.pipeline_mode<synchronous>, transform_indices = @transform_3, window_bounds = array<i64: 1, 32>}, {pipeline_mode = #tpu.pipeline_mode<synchronous>, transform_indices = @transform_4, window_bounds = array<i64: 3, 32, 128>}, {transform_indices = @transform_5, window_bounds = array<i64: 16, 128>}]} {
    %c0 = arith.constant 0 : index
    %c0_0 = arith.constant 0 : index
    %c0_1 = arith.constant 0 : index
    %0 = vector.load %arg1[%c0, %c0_0, %c0_1] : memref<16x24x48xbf16, #tpu.memory_space<vmem>>, vector<16x24x48xbf16>
    %cst = arith.constant 0.000000e+00 : f32
    %1 = vector.broadcast %cst : f32 to vector<256x32xf32>
    %2 = vector.extract_strided_slice %0 {offsets = [0, 0, 0], sizes = [16, 16, 48], strides = [1, 1, 1]} : vector<16x24x48xbf16> to vector<16x16x48xbf16>
    %3 = vector.shape_cast %2 : vector<16x16x48xbf16> to vector<256x48xbf16>
    %c0_2 = arith.constant 0 : index
    %c0_3 = arith.constant 0 : index
    %c0_4 = arith.constant 0 : index
    %4 = vector.load %arg3[%c0_2, %c0_3, %c0_4] : memref<3x48x32xbf16, #tpu.memory_space<vmem>>, vector<1x48x32xbf16>
    %5 = vector.shape_cast %4 : vector<1x48x32xbf16> to vector<48x32xbf16>
    %cst_5 = arith.constant dense<0.000000e+00> : vector<256x32xf32>
    %6 = tpu.matmul %3, %5, %cst_5 {dimension_numbers = #tpu.dot_dimension_numbers<[1], [0], [0], [1], [0, 0, 1, 1], [], []>} : vector<256x48xbf16>, vector<48x32xbf16>, vector<256x32xf32> -> vector<256x32xf32>
    %7 = arith.addf %1, %6 : vector<256x32xf32>
    %8 = vector.extract_strided_slice %0 {offsets = [0, 1, 0], sizes = [16, 16, 48], strides = [1, 1, 1]} : vector<16x24x48xbf16> to vector<16x16x48xbf16>
    %9 = vector.shape_cast %8 : vector<16x16x48xbf16> to vector<256x48xbf16>
    %c1 = arith.constant 1 : index
    %c0_6 = arith.constant 0 : index
    %c0_7 = arith.constant 0 : index
    %10 = vector.load %arg3[%c1, %c0_6, %c0_7] : memref<3x48x32xbf16, #tpu.memory_space<vmem>>, vector<1x48x32xbf16>
    %11 = vector.shape_cast %10 : vector<1x48x32xbf16> to vector<48x32xbf16>
    %cst_8 = arith.constant dense<0.000000e+00> : vector<256x32xf32>
    %12 = tpu.matmul %9, %11, %cst_8 {dimension_numbers = #tpu.dot_dimension_numbers<[1], [0], [0], [1], [0, 0, 1, 1], [], []>} : vector<256x48xbf16>, vector<48x32xbf16>, vector<256x32xf32> -> vector<256x32xf32>
    %13 = arith.addf %7, %12 : vector<256x32xf32>
    %14 = vector.extract_strided_slice %0 {offsets = [0, 2, 0], sizes = [16, 16, 48], strides = [1, 1, 1]} : vector<16x24x48xbf16> to vector<16x16x48xbf16>
    %15 = vector.shape_cast %14 : vector<16x16x48xbf16> to vector<256x48xbf16>
    %c2 = arith.constant 2 : index
    %c0_9 = arith.constant 0 : index
    %c0_10 = arith.constant 0 : index
    %16 = vector.load %arg3[%c2, %c0_9, %c0_10] : memref<3x48x32xbf16, #tpu.memory_space<vmem>>, vector<1x48x32xbf16>
    %17 = vector.shape_cast %16 : vector<1x48x32xbf16> to vector<48x32xbf16>
    %cst_11 = arith.constant dense<0.000000e+00> : vector<256x32xf32>
    %18 = tpu.matmul %15, %17, %cst_11 {dimension_numbers = #tpu.dot_dimension_numbers<[1], [0], [0], [1], [0, 0, 1, 1], [], []>} : vector<256x48xbf16>, vector<48x32xbf16>, vector<256x32xf32> -> vector<256x32xf32>
    %19 = arith.addf %13, %18 : vector<256x32xf32>
    %c0_12 = arith.constant 0 : index
    %c0_13 = arith.constant 0 : index
    %20 = vector.load %arg4[%c0_12, %c0_13] : memref<1x32xf32, #tpu.memory_space<vmem>>, vector<1x32xf32>
    %21 = vector.broadcast %20 : vector<1x32xf32> to vector<256x32xf32>
    %22 = arith.addf %19, %21 : vector<256x32xf32>
    %23 = vector.shape_cast %22 : vector<256x32xf32> to vector<16x16x32xf32>
    %24 = tpu.iota {dimensions = array<i32: 1>} : vector<16x16x32xi32>
    %cst_14 = arith.constant 0.000000e+00 : f32
    %25 = vector.broadcast %cst_14 : f32 to vector<16x128xf32>
    %c0_15 = arith.constant 0 : index
    %c0_16 = arith.constant 0 : index
    %c0_17 = arith.constant 0 : index
    %26 = vector.load %arg2[%c0_15, %c0_16, %c0_17] : memref<16x1x8xi32, #tpu.memory_space<vmem>>, vector<16x1x1xi32>
    %c0_18 = arith.constant 0 : index
    %c0_19 = arith.constant 0 : index
    %c1_20 = arith.constant 1 : index
    %27 = vector.load %arg2[%c0_18, %c0_19, %c1_20] : memref<16x1x8xi32, #tpu.memory_space<vmem>>, vector<16x1x1xi32>
    %28 = vector.broadcast %26 : vector<16x1x1xi32> to vector<16x16x32xi32>
    %29 = arith.cmpi sge, %24, %28 : vector<16x16x32xi32>
    %30 = vector.broadcast %27 : vector<16x1x1xi32> to vector<16x16x32xi32>
    %31 = arith.cmpi slt, %24, %30 : vector<16x16x32xi32>
    %32 = arith.andi %29, %31 : vector<16x16x32xi1>
    %cst_21 = arith.constant 0.000000e+00 : f32
    %33 = vector.broadcast %cst_21 : f32 to vector<16x16x32xf32>
    %34 = arith.select %32, %23, %33 : vector<16x16x32xi1>, vector<16x16x32xf32>
    %cst_22 = arith.constant dense<0xFF800000> : vector<16x32xf32>
    %35 = vector.multi_reduction <maximumf>, %34, %cst_22 [1] : vector<16x16x32xf32> to vector<16x32xf32>
    %cst_23 = arith.constant 0.000000e+00 : f32
    %36 = vector.broadcast %cst_23 : f32 to vector<16x32xf32>
    %37 = arith.maximumf %35, %36 : vector<16x32xf32>
    %38 = arith.truncf %37 : vector<16x32xf32> to vector<16x32xbf16>
    %c0_24 = arith.constant 0 : index
    %c0_25 = arith.constant 0 : index
    %c0_26 = arith.constant 0 : index
    %39 = vector.load %arg5[%c0_24, %c0_25, %c0_26] : memref<3x32x128xbf16, #tpu.memory_space<vmem>>, vector<1x32x128xbf16>
    %40 = vector.shape_cast %39 : vector<1x32x128xbf16> to vector<32x128xbf16>
    %cst_27 = arith.constant dense<0.000000e+00> : vector<16x128xf32>
    %41 = tpu.matmul %38, %40, %cst_27 {dimension_numbers = #tpu.dot_dimension_numbers<[1], [0], [0], [1], [0, 0, 1, 1], [], []>} : vector<16x32xbf16>, vector<32x128xbf16>, vector<16x128xf32> -> vector<16x128xf32>
    %42 = arith.addf %25, %41 : vector<16x128xf32>
    %c0_28 = arith.constant 0 : index
    %c0_29 = arith.constant 0 : index
    %c2_30 = arith.constant 2 : index
    %43 = vector.load %arg2[%c0_28, %c0_29, %c2_30] : memref<16x1x8xi32, #tpu.memory_space<vmem>>, vector<16x1x1xi32>
    %c0_31 = arith.constant 0 : index
    %c0_32 = arith.constant 0 : index
    %c3 = arith.constant 3 : index
    %44 = vector.load %arg2[%c0_31, %c0_32, %c3] : memref<16x1x8xi32, #tpu.memory_space<vmem>>, vector<16x1x1xi32>
    %45 = vector.broadcast %43 : vector<16x1x1xi32> to vector<16x16x32xi32>
    %46 = arith.cmpi sge, %24, %45 : vector<16x16x32xi32>
    %47 = vector.broadcast %44 : vector<16x1x1xi32> to vector<16x16x32xi32>
    %48 = arith.cmpi slt, %24, %47 : vector<16x16x32xi32>
    %49 = arith.andi %46, %48 : vector<16x16x32xi1>
    %cst_33 = arith.constant 0.000000e+00 : f32
    %50 = vector.broadcast %cst_33 : f32 to vector<16x16x32xf32>
    %51 = arith.select %49, %23, %50 : vector<16x16x32xi1>, vector<16x16x32xf32>
    %cst_34 = arith.constant dense<0xFF800000> : vector<16x32xf32>
    %52 = vector.multi_reduction <maximumf>, %51, %cst_34 [1] : vector<16x16x32xf32> to vector<16x32xf32>
    %cst_35 = arith.constant 0.000000e+00 : f32
    %53 = vector.broadcast %cst_35 : f32 to vector<16x32xf32>
    %54 = arith.maximumf %52, %53 : vector<16x32xf32>
    %55 = arith.truncf %54 : vector<16x32xf32> to vector<16x32xbf16>
    %c1_36 = arith.constant 1 : index
    %c0_37 = arith.constant 0 : index
    %c0_38 = arith.constant 0 : index
    %56 = vector.load %arg5[%c1_36, %c0_37, %c0_38] : memref<3x32x128xbf16, #tpu.memory_space<vmem>>, vector<1x32x128xbf16>
    %57 = vector.shape_cast %56 : vector<1x32x128xbf16> to vector<32x128xbf16>
    %cst_39 = arith.constant dense<0.000000e+00> : vector<16x128xf32>
    %58 = tpu.matmul %55, %57, %cst_39 {dimension_numbers = #tpu.dot_dimension_numbers<[1], [0], [0], [1], [0, 0, 1, 1], [], []>} : vector<16x32xbf16>, vector<32x128xbf16>, vector<16x128xf32> -> vector<16x128xf32>
    %59 = arith.addf %42, %58 : vector<16x128xf32>
    %c0_40 = arith.constant 0 : index
    %c0_41 = arith.constant 0 : index
    %c4 = arith.constant 4 : index
    %60 = vector.load %arg2[%c0_40, %c0_41, %c4] : memref<16x1x8xi32, #tpu.memory_space<vmem>>, vector<16x1x1xi32>
    %c0_42 = arith.constant 0 : index
    %c0_43 = arith.constant 0 : index
    %c5 = arith.constant 5 : index
    %61 = vector.load %arg2[%c0_42, %c0_43, %c5] : memref<16x1x8xi32, #tpu.memory_space<vmem>>, vector<16x1x1xi32>
    %62 = vector.broadcast %60 : vector<16x1x1xi32> to vector<16x16x32xi32>
    %63 = arith.cmpi sge, %24, %62 : vector<16x16x32xi32>
    %64 = vector.broadcast %61 : vector<16x1x1xi32> to vector<16x16x32xi32>
    %65 = arith.cmpi slt, %24, %64 : vector<16x16x32xi32>
    %66 = arith.andi %63, %65 : vector<16x16x32xi1>
    %cst_44 = arith.constant 0.000000e+00 : f32
    %67 = vector.broadcast %cst_44 : f32 to vector<16x16x32xf32>
    %68 = arith.select %66, %23, %67 : vector<16x16x32xi1>, vector<16x16x32xf32>
    %cst_45 = arith.constant dense<0xFF800000> : vector<16x32xf32>
    %69 = vector.multi_reduction <maximumf>, %68, %cst_45 [1] : vector<16x16x32xf32> to vector<16x32xf32>
    %cst_46 = arith.constant 0.000000e+00 : f32
    %70 = vector.broadcast %cst_46 : f32 to vector<16x32xf32>
    %71 = arith.maximumf %69, %70 : vector<16x32xf32>
    %72 = arith.truncf %71 : vector<16x32xf32> to vector<16x32xbf16>
    %c2_47 = arith.constant 2 : index
    %c0_48 = arith.constant 0 : index
    %c0_49 = arith.constant 0 : index
    %73 = vector.load %arg5[%c2_47, %c0_48, %c0_49] : memref<3x32x128xbf16, #tpu.memory_space<vmem>>, vector<1x32x128xbf16>
    %74 = vector.shape_cast %73 : vector<1x32x128xbf16> to vector<32x128xbf16>
    %cst_50 = arith.constant dense<0.000000e+00> : vector<16x128xf32>
    %75 = tpu.matmul %72, %74, %cst_50 {dimension_numbers = #tpu.dot_dimension_numbers<[1], [0], [0], [1], [0, 0, 1, 1], [], []>} : vector<16x32xbf16>, vector<32x128xbf16>, vector<16x128xf32> -> vector<16x128xf32>
    %76 = arith.addf %59, %75 : vector<16x128xf32>
    %c0_51 = arith.constant 0 : index
    %c0_52 = arith.constant 0 : index
    %77 = vector.load %arg6[%c0_51, %c0_52] : memref<16x128xf32, #tpu.memory_space<vmem>>, vector<16x128xf32>
    tpu.vector_store %arg6[%c0_51, %c0_52], %76 {strides = array<i32>} : memref<16x128xf32, #tpu.memory_space<vmem>>, vector<16x128xf32>,
    return
  }
  func.func @transform_0(%arg0: i32) -> (i32, i32, i32) {
    %c0_i32 = arith.constant 0 : i32
    %c0_i32_0 = arith.constant 0 : i32
    %c0_i32_1 = arith.constant 0 : i32
    return %arg0, %c0_i32, %c0_i32_0 : i32, i32, i32
  }
  func.func @transform_1(%arg0: i32) -> (i32, i32, i32) {
    %c0_i32 = arith.constant 0 : i32
    %c0_i32_0 = arith.constant 0 : i32
    %c0_i32_1 = arith.constant 0 : i32
    return %arg0, %c0_i32, %c0_i32_0 : i32, i32, i32
  }
  func.func @transform_2(%arg0: i32) -> (i32, i32, i32) {
    %c0_i32 = arith.constant 0 : i32
    %c0_i32_0 = arith.constant 0 : i32
    %c0_i32_1 = arith.constant 0 : i32
    %c0_i32_2 = arith.constant 0 : i32
    return %c0_i32, %c0_i32_0, %c0_i32_1 : i32, i32, i32
  }
  func.func @transform_3(%arg0: i32) -> (i32, i32) {
    %c0_i32 = arith.constant 0 : i32
    %c0_i32_0 = arith.constant 0 : i32
    %c0_i32_1 = arith.constant 0 : i32
    return %c0_i32, %c0_i32_0 : i32, i32
  }
  func.func @transform_4(%arg0: i32) -> (i32, i32, i32) {
    %c0_i32 = arith.constant 0 : i32
    %c0_i32_0 = arith.constant 0 : i32
    %c0_i32_1 = arith.constant 0 : i32
    %c0_i32_2 = arith.constant 0 : i32
    return %c0_i32, %c0_i32_0, %c0_i32_1 : i32, i32, i32
  }
  func.func @transform_5(%arg0: i32) -> (i32, i32) {
    %c0_i32 = arith.constant 0 : i32
    %c0_i32_0 = arith.constant 0 : i32
    return %arg0, %c0_i32 : i32, i32
  }
}

</mosaic_0001>

<llo_original>
// kernel: tpu_custom_call.1
$region0: #{tpu_custom_call.1}
  #allocation0 [shape = 'u32[]', space=smem, size = 0x4, offset = 0x4, fixed_abs, tag = 'smem constant byte address 0x4 - core index']
  #allocation1 [shape = 'u32[72,128]{1,0:T(1,128)}', space=vmem, size = 0x9000, scoped, tag = 'internal scratch']
  %s0 = inlined_call_operand.hbm [shape: bf16[16,24,48], index: 0, kind: input, shape index: {}]
  %s1 = inlined_call_operand.vmem [shape: s32[16,1,8], index: 1, kind: input, shape index: {}]
  %s2 = inlined_call_operand.vmem [shape: bf16[3,48,32], index: 2, kind: input, shape index: {}]
  %s3 = inlined_call_operand.vmem [shape: f32[1,32], index: 3, kind: input, shape index: {}]
  %s4 = inlined_call_operand.vmem [shape: bf16[3,32,128], index: 4, kind: input, shape index: {}]
  %s5 = inlined_call_operand.hbm [shape: f32[16,128], index: 5, kind: output, shape index: {}]
  %s6 = sld [smem:[#allocation0]]
  $region34: #{tpu_custom_call.1} parent=0
    _
  %s8 = ssub.s32 1, %s6
  %s9 = scalar_select 0, %s8, %s6
  $region1: #{tpu_custom_call.1} parent=0
    #allocation2 [shape = 'u8[98304]{0}', space=vmem, size = 0x18000, scoped, tag = 'input window, operand 0, single buffered']
    #allocation3 [shape = 's32[1]{0}', space=sflag, size = 0x4, scoped, tag = 'scoped memory for tpu_custom_call.1']
    #allocation4 [shape = 's32[1]{0}', space=sflag, size = 0x4, scoped, tag = 'scoped memory for tpu_custom_call.1']
    #allocation5 [shape = 'u8[8192]{0}', space=vmem, size = 0x2000, scoped, tag = 'output window, operand 0, single buffered']
    %10 = vsyncpa [#allocation3], 0
    %11 = vsyncpa [#allocation4], 0
    // Predicated region
    $region2: #{tpu_custom_call.1} parent=1 // pred_check
      _
    $region3: #{tpu_custom_call.1} parent=1 // pred_check_branch
      %13 = sbr.rel (0) target = $region5
    $region4: #{tpu_custom_call.1} parent=1 // pred_region
      %15 = vsyncadd [#allocation3], 0
      %s16 = sshll.u32 %s0, 4
      %s17 = int_to_ptr.hbm [resolvable:$true] %s16
      %s18 = sshll.u32 [#allocation2], 4
      %s19 = int_to_ptr.vmem [resolvable:$true] %s18
      %24 = dma.hbm_to_vmem [thread:$0]  %s17, 3072, %s19, [#allocation3], 64, 64, 4
    $region5: #{tpu_custom_call.1} parent=1 // pred_fallthru
      _
    // Predicated region
    $region6: #{tpu_custom_call.1} parent=1 // pred_check
      _
    $region7: #{tpu_custom_call.1} parent=1 // pred_check_branch
      %26 = sbr.rel (0) target = $region9
    $region8: #{tpu_custom_call.1} parent=1 // pred_region
      _
    $region9: #{tpu_custom_call.1} parent=1 // pred_fallthru
      _
    // Predicated region
    $region10: #{tpu_custom_call.1} parent=1 // pred_check
      _
    $region11: #{tpu_custom_call.1} parent=1 // pred_check_branch
      %28 = sbr.rel (0) target = $region13
    $region12: #{tpu_custom_call.1} parent=1 // pred_region
      _
    $region13: #{tpu_custom_call.1} parent=1 // pred_fallthru
      _
    // Predicated region
    $region14: #{tpu_custom_call.1} parent=1 // pred_check
      _
    $region15: #{tpu_custom_call.1} parent=1 // pred_check_branch
      %30 = sbr.rel (0) target = $region17
    $region16: #{tpu_custom_call.1} parent=1 // pred_region
      _
    $region17: #{tpu_custom_call.1} parent=1 // pred_fallthru
      _
    // Predicated region
    $region18: #{tpu_custom_call.1} parent=1 // pred_check
      _
    $region19: #{tpu_custom_call.1} parent=1 // pred_check_branch
      %32 = sbr.rel (0) target = $region21
    $region20: #{tpu_custom_call.1} parent=1 // pred_region
      _
    $region21: #{tpu_custom_call.1} parent=1 // pred_fallthru
      _
    // Predicated region
    $region22: #{tpu_custom_call.1} parent=1 // pred_check
      _
    $region23: #{tpu_custom_call.1} parent=1 // pred_check_branch
      %34 = sbr.rel (0) target = $region25
    $region24: #{tpu_custom_call.1} parent=1 // pred_region
      %36 = dma.done [#allocation3], 3072
    $region25: #{tpu_custom_call.1} parent=1 // pred_fallthru
      _
    %v38 = vld [vmem:[#allocation2] sm:$0xf]
    %v39 = vld [vmem:[#allocation2 + $0x4] sm:$0xf]
    %v40 = vld [vmem:[#allocation2 + $0x8] sm:$0xf]
    %v41 = vld [vmem:[#allocation2 + $0xc] sm:$0xf]
    %v42 = vld [vmem:[#allocation2 + $0x10] sm:$0xf]
    %v43 = vld [vmem:[#allocation2 + $0x14] sm:$0xf]
    %v44 = vld [vmem:[#allocation2 + $0x18] sm:$0xf]
    %v45 = vld [vmem:[#allocation2 + $0x1c] sm:$0xf]
    %v46 = vld [vmem:[#allocation2 + $0x20] sm:$0xf]
    %v47 = vld [vmem:[#allocation2 + $0x24] sm:$0xf]
    %v48 = vld [vmem:[#allocation2 + $0x28] sm:$0xf]
    %v49 = vld [vmem:[#allocation2 + $0x2c] sm:$0xf]
    %v50 = vld [vmem:[#allocation2 + $0x30] sm:$0xf]
    %v51 = vld [vmem:[#allocation2 + $0x34] sm:$0xf]
    %v52 = vld [vmem:[#allocation2 + $0x38] sm:$0xf]
    %v53 = vld [vmem:[#allocation2 + $0x3c] sm:$0xf]
    %v54 = vld [vmem:[#allocation2 + $0x40] sm:$0xf]
    %v55 = vld [vmem:[#allocation2 + $0x44] sm:$0xf]
    %v56 = vld [vmem:[#allocation2 + $0x48] sm:$0xf]
    %v57 = vld [vmem:[#allocation2 + $0x4c] sm:$0xf]
    %v58 = vld [vmem:[#allocation2 + $0x50] sm:$0xf]
    %v59 = vld [vmem:[#allocation2 + $0x54] sm:$0xf]
    %v60 = vld [vmem:[#allocation2 + $0x58] sm:$0xf]
    %v61 = vld [vmem:[#allocation2 + $0x5c] sm:$0xf]
    %v62 = vld [vmem:[#allocation2 + $0x60] sm:$0xf]
    %v63 = vld [vmem:[#allocation2 + $0x64] sm:$0xf]
    %v64 = vld [vmem:[#allocation2 + $0x68] sm:$0xf]
    %v65 = vld [vmem:[#allocation2 + $0x6c] sm:$0xf]
    %v66 = vld [vmem:[#allocation2 + $0x70] sm:$0xf]
    %v67 = vld [vmem:[#allocation2 + $0x74] sm:$0xf]
    %v68 = vld [vmem:[#allocation2 + $0x78] sm:$0xf]
    %v69 = vld [vmem:[#allocation2 + $0x7c] sm:$0xf]
    %v70 = vld [vmem:[#allocation2 + $0x80] sm:$0xf]
    %v71 = vld [vmem:[#allocation2 + $0x84] sm:$0xf]
    %v72 = vld [vmem:[#allocation2 + $0x88] sm:$0xf]
    %v73 = vld [vmem:[#allocation2 + $0x8c] sm:$0xf]
    %v74 = vld [vmem:[#allocation2 + $0x90] sm:$0xf]
    %v75 = vld [vmem:[#allocation2 + $0x94] sm:$0xf]
    %v76 = vld [vmem:[#allocation2 + $0x98] sm:$0xf]
    %v77 = vld [vmem:[#allocation2 + $0x9c] sm:$0xf]
    %v78 = vld [vmem:[#allocation2 + $0xa0] sm:$0xf]
    %v79 = vld [vmem:[#allocation2 + $0xa4] sm:$0xf]
    %v80 = vld [vmem:[#allocation2 + $0xa8] sm:$0xf]
    %v81 = vld [vmem:[#allocation2 + $0xac] sm:$0xf]
    %v82 = vld [vmem:[#allocation2 + $0xb0] sm:$0xf]
    %v83 = vld [vmem:[#allocation2 + $0xb4] sm:$0xf]
    %v84 = vld [vmem:[#allocation2 + $0xb8] sm:$0xf]
    %v85 = vld [vmem:[#allocation2 + $0xbc] sm:$0xf]
    %v86 = vld [vmem:[%s2] sm:$0xf]
    %v87 = vld [vmem:[%s2 + $0x4] sm:$0xf]
    %v88 = vld [vmem:[%s2 + $0x8] sm:$0xf]
    %v89 = vld [vmem:[%s2 + $0xc] sm:$0xf]
    %v90 = vld [vmem:[%s2 + $0x10] sm:$0xf]
    %v91 = vld [vmem:[%s2 + $0x14] sm:$0xf]
    %vm92 = vsmask.f32 3328
    %vm93 = vsmask.f32 7440
    %vm94 = vmor %vm92, %vm93
    %v96 = vshrl.u32 %v38, 16
    %v98 = vrot.slane %v96, 4
    %v99 = vshll.u32 %v38, 16
    %v101 = vrot.slane %v99, 5
    %v102 = vor.u32 %v98, %v101
    %v103 = vrot.slane %v102, 4
    %v105 = vshll.u32 %v39, 16
    %v107 = vrot.slane %v105, 5
    %v108 = vsel %vm94, %v103, %v107
    %v109 = vshrl.u32 %v39, 16
    %v111 = vrot.slane %v109, 4
    %v112 = vor.u32 %v111, %v107
    %v113 = vrot.slane %v112, 4
    %v115 = vshll.u32 %v40, 16
    %v117 = vrot.slane %v115, 5
    %v118 = vsel %vm94, %v113, %v117
    %v120 = vshrl.u32 %v41, 16
    %v122 = vrot.slane %v120, 4
    %v123 = vshll.u32 %v41, 16
    %v125 = vrot.slane %v123, 5
    %v126 = vor.u32 %v122, %v125
    %v127 = vrot.slane %v126, 4
    %v129 = vshll.u32 %v42, 16
    %v131 = vrot.slane %v129, 5
    %v132 = vsel %vm94, %v127, %v131
    %v133 = vshrl.u32 %v42, 16
    %v135 = vrot.slane %v133, 4
    %v136 = vor.u32 %v135, %v131
    %v137 = vrot.slane %v136, 4
    %v139 = vshll.u32 %v43, 16
    %v141 = vrot.slane %v139, 5
    %v142 = vsel %vm94, %v137, %v141
    %v144 = vshrl.u32 %v44, 16
    %v146 = vrot.slane %v144, 4
    %v147 = vshll.u32 %v44, 16
    %v149 = vrot.slane %v147, 5
    %v150 = vor.u32 %v146, %v149
    %v151 = vrot.slane %v150, 4
    %v153 = vshll.u32 %v45, 16
    %v155 = vrot.slane %v153, 5
    %v156 = vsel %vm94, %v151, %v155
    %v157 = vshrl.u32 %v45, 16
    %v159 = vrot.slane %v157, 4
    %v160 = vor.u32 %v159, %v155
    %v161 = vrot.slane %v160, 4
    %v163 = vshll.u32 %v46, 16
    %v165 = vrot.slane %v163, 5
    %v166 = vsel %vm94, %v161, %v165
    %v168 = vshrl.u32 %v47, 16
    %v170 = vrot.slane %v168, 4
    %v171 = vshll.u32 %v47, 16
    %v173 = vrot.slane %v171, 5
    %v174 = vor.u32 %v170, %v173
    %v175 = vrot.slane %v174, 4
    %v177 = vshll.u32 %v48, 16
    %v179 = vrot.slane %v177, 5
    %v180 = vsel %vm94, %v175, %v179
    %v181 = vshrl.u32 %v48, 16
    %v183 = vrot.slane %v181, 4
    %v184 = vor.u32 %v183, %v179
    %v185 = vrot.slane %v184, 4
    %v187 = vshll.u32 %v49, 16
    %v189 = vrot.slane %v187, 5
    %v190 = vsel %vm94, %v185, %v189
    %v192 = vshrl.u32 %v50, 16
    %v194 = vrot.slane %v192, 4
    %v195 = vshll.u32 %v50, 16
    %v197 = vrot.slane %v195, 5
    %v198 = vor.u32 %v194, %v197
    %v199 = vrot.slane %v198, 4
    %v201 = vshll.u32 %v51, 16
    %v203 = vrot.slane %v201, 5
    %v204 = vsel %vm94, %v199, %v203
    %v205 = vshrl.u32 %v51, 16
    %v207 = vrot.slane %v205, 4
    %v208 = vor.u32 %v207, %v203
    %v209 = vrot.slane %v208, 4
    %v211 = vshll.u32 %v52, 16
    %v213 = vrot.slane %v211, 5
    %v214 = vsel %vm94, %v209, %v213
    %v216 = vshrl.u32 %v53, 16
    %v218 = vrot.slane %v216, 4
    %v219 = vshll.u32 %v53, 16
    %v221 = vrot.slane %v219, 5
    %v222 = vor.u32 %v218, %v221
    %v223 = vrot.slane %v222, 4
    %v225 = vshll.u32 %v54, 16
    %v227 = vrot.slane %v225, 5
    %v228 = vsel %vm94, %v223, %v227
    %v229 = vshrl.u32 %v54, 16
    %v231 = vrot.slane %v229, 4
    %v232 = vor.u32 %v231, %v227
    %v233 = vrot.slane %v232, 4
    %v235 = vshll.u32 %v55, 16
    %v237 = vrot.slane %v235, 5
    %v238 = vsel %vm94, %v233, %v237
    %v240 = vshrl.u32 %v56, 16
    %v242 = vrot.slane %v240, 4
    %v243 = vshll.u32 %v56, 16
    %v245 = vrot.slane %v243, 5
    %v246 = vor.u32 %v242, %v245
    %v247 = vrot.slane %v246, 4
    %v249 = vshll.u32 %v57, 16
    %v251 = vrot.slane %v249, 5
    %v252 = vsel %vm94, %v247, %v251
    %v253 = vshrl.u32 %v57, 16
    %v255 = vrot.slane %v253, 4
    %v256 = vor.u32 %v255, %v251
    %v257 = vrot.slane %v256, 4
    %v259 = vshll.u32 %v58, 16
    %v261 = vrot.slane %v259, 5
    %v262 = vsel %vm94, %v257, %v261
    %v264 = vshrl.u32 %v59, 16
    %v266 = vrot.slane %v264, 4
    %v267 = vshll.u32 %v59, 16
    %v269 = vrot.slane %v267, 5
    %v270 = vor.u32 %v266, %v269
    %v271 = vrot.slane %v270, 4
    %v273 = vshll.u32 %v60, 16
    %v275 = vrot.slane %v273, 5
    %v276 = vsel %vm94, %v271, %v275
    %v277 = vshrl.u32 %v60, 16
    %v279 = vrot.slane %v277, 4
    %v280 = vor.u32 %v279, %v275
    %v281 = vrot.slane %v280, 4
    %v283 = vshll.u32 %v61, 16
    %v285 = vrot.slane %v283, 5
    %v286 = vsel %vm94, %v281, %v285
    %v288 = vshrl.u32 %v62, 16
    %v290 = vrot.slane %v288, 4
    %v291 = vshll.u32 %v62, 16
    %v293 = vrot.slane %v291, 5
    %v294 = vor.u32 %v290, %v293
    %v295 = vrot.slane %v294, 4
    %v297 = vshll.u32 %v63, 16
    %v299 = vrot.slane %v297, 5
    %v300 = vsel %vm94, %v295, %v299
    %v301 = vshrl.u32 %v63, 16
    %v303 = vrot.slane %v301, 4
    %v304 = vor.u32 %v303, %v299
    %v305 = vrot.slane %v304, 4
    %v307 = vshll.u32 %v64, 16
    %v309 = vrot.slane %v307, 5
    %v310 = vsel %vm94, %v305, %v309
    %v312 = vshrl.u32 %v65, 16
    %v314 = vrot.slane %v312, 4
    %v315 = vshll.u32 %v65, 16
    %v317 = vrot.slane %v315, 5
    %v318 = vor.u32 %v314, %v317
    %v319 = vrot.slane %v318, 4
    %v321 = vshll.u32 %v66, 16
    %v323 = vrot.slane %v321, 5
    %v324 = vsel %vm94, %v319, %v323
    %v325 = vshrl.u32 %v66, 16
    %v327 = vrot.slane %v325, 4
    %v328 = vor.u32 %v327, %v323
    %v329 = vrot.slane %v328, 4
    %v331 = vshll.u32 %v67, 16
    %v333 = vrot.slane %v331, 5
    %v334 = vsel %vm94, %v329, %v333
    %v336 = vshrl.u32 %v68, 16
    %v338 = vrot.slane %v336, 4
    %v339 = vshll.u32 %v68, 16
    %v341 = vrot.slane %v339, 5
    %v342 = vor.u32 %v338, %v341
    %v343 = vrot.slane %v342, 4
    %v345 = vshll.u32 %v69, 16
    %v347 = vrot.slane %v345, 5
    %v348 = vsel %vm94, %v343, %v347
    %v349 = vshrl.u32 %v69, 16
    %v351 = vrot.slane %v349, 4
    %v352 = vor.u32 %v351, %v347
    %v353 = vrot.slane %v352, 4
    %v355 = vshll.u32 %v70, 16
    %v357 = vrot.slane %v355, 5
    %v358 = vsel %vm94, %v353, %v357
    %v360 = vshrl.u32 %v71, 16
    %v362 = vrot.slane %v360, 4
    %v363 = vshll.u32 %v71, 16
    %v365 = vrot.slane %v363, 5
    %v366 = vor.u32 %v362, %v365
    %v367 = vrot.slane %v366, 4
    %v369 = vshll.u32 %v72, 16
    %v371 = vrot.slane %v369, 5
    %v372 = vsel %vm94, %v367, %v371
    %v373 = vshrl.u32 %v72, 16
    %v375 = vrot.slane %v373, 4
    %v376 = vor.u32 %v375, %v371
    %v377 = vrot.slane %v376, 4
    %v379 = vshll.u32 %v73, 16
    %v381 = vrot.slane %v379, 5
    %v382 = vsel %vm94, %v377, %v381
    %v384 = vshrl.u32 %v74, 16
    %v386 = vrot.slane %v384, 4
    %v387 = vshll.u32 %v74, 16
    %v389 = vrot.slane %v387, 5
    %v390 = vor.u32 %v386, %v389
    %v391 = vrot.slane %v390, 4
    %v393 = vshll.u32 %v75, 16
    %v395 = vrot.slane %v393, 5
    %v396 = vsel %vm94, %v391, %v395
    %v397 = vshrl.u32 %v75, 16
    %v399 = vrot.slane %v397, 4
    %v400 = vor.u32 %v399, %v395
    %v401 = vrot.slane %v400, 4
    %v403 = vshll.u32 %v76, 16
    %v405 = vrot.slane %v403, 5
    %v406 = vsel %vm94, %v401, %v405
    %v408 = vshrl.u32 %v77, 16
    %v410 = vrot.slane %v408, 4
    %v411 = vshll.u32 %v77, 16
    %v413 = vrot.slane %v411, 5
    %v414 = vor.u32 %v410, %v413
    %v415 = vrot.slane %v414, 4
    %v417 = vshll.u32 %v78, 16
    %v419 = vrot.slane %v417, 5
    %v420 = vsel %vm94, %v415, %v419
    %v421 = vshrl.u32 %v78, 16
    %v423 = vrot.slane %v421, 4
    %v424 = vor.u32 %v423, %v419
    %v425 = vrot.slane %v424, 4
    %v427 = vshll.u32 %v79, 16
    %v429 = vrot.slane %v427, 5
    %v430 = vsel %vm94, %v425, %v429
    %v432 = vshrl.u32 %v80, 16
    %v434 = vrot.slane %v432, 4
    %v435 = vshll.u32 %v80, 16
    %v437 = vrot.slane %v435, 5
    %v438 = vor.u32 %v434, %v437
    %v439 = vrot.slane %v438, 4
    %v441 = vshll.u32 %v81, 16
    %v443 = vrot.slane %v441, 5
    %v444 = vsel %vm94, %v439, %v443
    %v445 = vshrl.u32 %v81, 16
    %v447 = vrot.slane %v445, 4
    %v448 = vor.u32 %v447, %v443
    %v449 = vrot.slane %v448, 4
    %v451 = vshll.u32 %v82, 16
    %v453 = vrot.slane %v451, 5
    %v454 = vsel %vm94, %v449, %v453
    %v456 = vshrl.u32 %v83, 16
    %v458 = vrot.slane %v456, 4
    %v459 = vshll.u32 %v83, 16
    %v461 = vrot.slane %v459, 5
    %v462 = vor.u32 %v458, %v461
    %v463 = vrot.slane %v462, 4
    %v465 = vshll.u32 %v84, 16
    %v467 = vrot.slane %v465, 5
    %v468 = vsel %vm94, %v463, %v467
    %v469 = vshrl.u32 %v84, 16
    %v471 = vrot.slane %v469, 4
    %v472 = vor.u32 %v471, %v467
    %v473 = vrot.slane %v472, 4
    %v475 = vshll.u32 %v85, 16
    %v477 = vrot.slane %v475, 5
    %v478 = vsel %vm94, %v473, %v477
    %s479 = scalar_lea.vmem %s2, 24
    %v480 = vld [vmem:[%s479] sm:$0xf]
    %v481 = vld [vmem:[%s479 + $0x4] sm:$0xf]
    %v482 = vld [vmem:[%s479 + $0x8] sm:$0xf]
    %v483 = vld [vmem:[%s479 + $0xc] sm:$0xf]
    %v484 = vld [vmem:[%s479 + $0x10] sm:$0xf]
    %v485 = vld [vmem:[%s479 + $0x14] sm:$0xf]
    %v486 = vunpack.c.l.b16 %v108
    %v487 = vunpack.c.l.b16 %v118
    %v488 = vunpack.c.l.b16 %v132
    %v489 = vunpack.c.l.b16 %v142
    %v490 = vunpack.c.l.b16 %v156
    %v491 = vunpack.c.l.b16 %v166
    %v492 = vunpack.c.l.b16 %v180
    %v493 = vunpack.c.l.b16 %v190
    %v494 = vunpack.c.l.b16 %v204
    %v495 = vunpack.c.l.b16 %v214
    %v496 = vunpack.c.l.b16 %v228
    %v497 = vunpack.c.l.b16 %v238
    %v498 = vunpack.c.l.b16 %v252
    %v499 = vunpack.c.l.b16 %v262
    %v500 = vunpack.c.l.b16 %v276
    %v501 = vunpack.c.l.b16 %v286
    %v502 = vunpack.c.l.b16 %v300
    %v503 = vunpack.c.l.b16 %v310
    %v504 = vunpack.c.l.b16 %v324
    %v505 = vunpack.c.l.b16 %v334
    %v506 = vunpack.c.l.b16 %v348
    %v507 = vunpack.c.l.b16 %v358
    %v508 = vunpack.c.l.b16 %v372
    %v509 = vunpack.c.l.b16 %v382
    %v510 = vunpack.c.l.b16 %v396
    %v511 = vunpack.c.l.b16 %v406
    %v512 = vunpack.c.l.b16 %v420
    %v513 = vunpack.c.l.b16 %v430
    %v514 = vunpack.c.l.b16 %v444
    %v515 = vunpack.c.l.b16 %v454
    %v516 = vunpack.c.l.b16 %v468
    %v517 = vunpack.c.l.b16 %v478
    %v518 = vpack.c.b16 %v487, %v486
    %v519 = vpack.c.b16 %v489, %v488
    %v520 = vpack.c.b16 %v491, %v490
    %v521 = vpack.c.b16 %v493, %v492
    %v522 = vpack.c.b16 %v495, %v494
    %v523 = vpack.c.b16 %v497, %v496
    %v524 = vpack.c.b16 %v499, %v498
    %v525 = vpack.c.b16 %v501, %v500
    %v526 = vpack.c.b16 %v503, %v502
    %v527 = vpack.c.b16 %v505, %v504
    %v528 = vpack.c.b16 %v507, %v506
    %v529 = vpack.c.b16 %v509, %v508
    %v530 = vpack.c.b16 %v511, %v510
    %v531 = vpack.c.b16 %v513, %v512
    %v532 = vpack.c.b16 %v515, %v514
    %v533 = vpack.c.b16 %v517, %v516
    %v540 = vunpack.c.l.b16 %v480
    %v541 = vunpack.c.l.b16 %v481
    %v542 = vunpack.c.l.b16 %v482
    %v543 = vunpack.c.l.b16 %v483
    %v544 = vunpack.c.l.b16 %v484
    %v545 = vunpack.c.l.b16 %v485
    %v546 = vpack.c.b16 %v541, %v540
    %v547 = vpack.c.b16 %v543, %v542
    %v548 = vpack.c.b16 %v545, %v544
    %vm552 = vcmask 392192
    %v554 = vsel %vm552, %v518, 0
    %v557 = vsel %vm552, %v519, 0
    %v560 = vsel %vm552, %v520, 0
    %v563 = vsel %vm552, %v521, 0
    %v566 = vsel %vm552, %v522, 0
    %v569 = vsel %vm552, %v523, 0
    %v572 = vsel %vm552, %v524, 0
    %v575 = vsel %vm552, %v525, 0
    %v578 = vsel %vm552, %v526, 0
    %v581 = vsel %vm552, %v527, 0
    %v584 = vsel %vm552, %v528, 0
    %v587 = vsel %vm552, %v529, 0
    %v590 = vsel %vm552, %v530, 0
    %v593 = vsel %vm552, %v531, 0
    %v596 = vsel %vm552, %v532, 0
    %v599 = vsel %vm552, %v533, 0
    %601 = vmatpush.bf16.msra.mxu0 0
    %602 = vmatpush.bf16.msra.mxu0 0
    %603 = vmatpush.bf16.msra.mxu0 0
    %604 = vmatpush.bf16.msra.mxu0 0
    %605 = vmatpush.bf16.msra.mxu0 0
    %606 = vmatpush.bf16.msra.mxu0 %v548
    %607 = vmatpush.bf16.msra.mxu0 %v547
    %608 = vmatpush.bf16.msra.mxu0 %v546
    %609 = vmatmul.bf16.gmra.mxu0 %v554
    %v610 = vpop.f32.mrf.mxu0
    %v611 = vadd.f32 0.0, %v610
    %v612 = vpop.f32.mrf.mxu0
    %v613 = vadd.f32 0.0, %v612
    %614 = vmatmul.bf16.gmra.mxu0 %v557
    %v615 = vpop.f32.mrf.mxu0
    %v616 = vadd.f32 0.0, %v615
    %v617 = vpop.f32.mrf.mxu0
    %v618 = vadd.f32 0.0, %v617
    %619 = vmatmul.bf16.gmra.mxu0 %v560
    %v620 = vpop.f32.mrf.mxu0
    %v621 = vadd.f32 0.0, %v620
    %v622 = vpop.f32.mrf.mxu0
    %v623 = vadd.f32 0.0, %v622
    %624 = vmatmul.bf16.gmra.mxu0 %v563
    %v625 = vpop.f32.mrf.mxu0
    %v626 = vadd.f32 0.0, %v625
    %v627 = vpop.f32.mrf.mxu0
    %v628 = vadd.f32 0.0, %v627
    %629 = vmatmul.bf16.gmra.mxu0 %v566
    %v630 = vpop.f32.mrf.mxu0
    %v631 = vadd.f32 0.0, %v630
    %v632 = vpop.f32.mrf.mxu0
    %v633 = vadd.f32 0.0, %v632
    %634 = vmatmul.bf16.gmra.mxu0 %v569
    %v635 = vpop.f32.mrf.mxu0
    %v636 = vadd.f32 0.0, %v635
    %v637 = vpop.f32.mrf.mxu0
    %v638 = vadd.f32 0.0, %v637
    %639 = vmatmul.bf16.gmra.mxu0 %v572
    %v640 = vpop.f32.mrf.mxu0
    %v641 = vadd.f32 0.0, %v640
    %v642 = vpop.f32.mrf.mxu0
    %v643 = vadd.f32 0.0, %v642
    %644 = vmatmul.bf16.gmra.mxu0 %v575
    %v645 = vpop.f32.mrf.mxu0
    %v646 = vadd.f32 0.0, %v645
    %v647 = vpop.f32.mrf.mxu0
    %v648 = vadd.f32 0.0, %v647
    %649 = vmatmul.bf16.gmra.mxu0 %v578
    %v650 = vpop.f32.mrf.mxu0
    %v651 = vadd.f32 0.0, %v650
    %v652 = vpop.f32.mrf.mxu0
    %v653 = vadd.f32 0.0, %v652
    %654 = vmatmul.bf16.gmra.mxu0 %v581
    %v655 = vpop.f32.mrf.mxu0
    %v656 = vadd.f32 0.0, %v655
    %v657 = vpop.f32.mrf.mxu0
    %v658 = vadd.f32 0.0, %v657
    %659 = vmatmul.bf16.gmra.mxu0 %v584
    %v660 = vpop.f32.mrf.mxu0
    %v661 = vadd.f32 0.0, %v660
    %v662 = vpop.f32.mrf.mxu0
    %v663 = vadd.f32 0.0, %v662
    %664 = vmatmul.bf16.gmra.mxu0 %v587
    %v665 = vpop.f32.mrf.mxu0
    %v666 = vadd.f32 0.0, %v665
    %v667 = vpop.f32.mrf.mxu0
    %v668 = vadd.f32 0.0, %v667
    %669 = vmatmul.bf16.gmra.mxu0 %v590
    %v670 = vpop.f32.mrf.mxu0
    %v671 = vadd.f32 0.0, %v670
    %v672 = vpop.f32.mrf.mxu0
    %v673 = vadd.f32 0.0, %v672
    %674 = vmatmul.bf16.gmra.mxu0 %v593
    %v675 = vpop.f32.mrf.mxu0
    %v676 = vadd.f32 0.0, %v675
    %v677 = vpop.f32.mrf.mxu0
    %v678 = vadd.f32 0.0, %v677
    %679 = vmatmul.bf16.gmra.mxu0 %v596
    %v680 = vpop.f32.mrf.mxu0
    %v681 = vadd.f32 0.0, %v680
    %v682 = vpop.f32.mrf.mxu0
    %v683 = vadd.f32 0.0, %v682
    %684 = vmatmul.bf16.gmra.mxu0 %v599
    %v685 = vpop.f32.mrf.mxu0
    %v686 = vadd.f32 0.0, %v685
    %v687 = vpop.f32.mrf.mxu0
    %v688 = vadd.f32 0.0, %v687
    %689 = vdwg.mxu0
    %v722 = vunpack.c.l.b16 %v38
    %v723 = vunpack.c.l.b16 %v39
    %v724 = vunpack.c.l.b16 %v41
    %v725 = vunpack.c.l.b16 %v42
    %v726 = vunpack.c.l.b16 %v44
    %v727 = vunpack.c.l.b16 %v45
    %v728 = vunpack.c.l.b16 %v47
    %v729 = vunpack.c.l.b16 %v48
    %v730 = vunpack.c.l.b16 %v50
    %v731 = vunpack.c.l.b16 %v51
    %v732 = vunpack.c.l.b16 %v53
    %v733 = vunpack.c.l.b16 %v54
    %v734 = vunpack.c.l.b16 %v56
    %v735 = vunpack.c.l.b16 %v57
    %v736 = vunpack.c.l.b16 %v59
    %v737 = vunpack.c.l.b16 %v60
    %v738 = vunpack.c.l.b16 %v62
    %v739 = vunpack.c.l.b16 %v63
    %v740 = vunpack.c.l.b16 %v65
    %v741 = vunpack.c.l.b16 %v66
    %v742 = vunpack.c.l.b16 %v68
    %v743 = vunpack.c.l.b16 %v69
    %v744 = vunpack.c.l.b16 %v71
    %v745 = vunpack.c.l.b16 %v72
    %v746 = vunpack.c.l.b16 %v74
    %v747 = vunpack.c.l.b16 %v75
    %v748 = vunpack.c.l.b16 %v77
    %v749 = vunpack.c.l.b16 %v78
    %v750 = vunpack.c.l.b16 %v80
    %v751 = vunpack.c.l.b16 %v81
    %v752 = vunpack.c.l.b16 %v83
    %v753 = vunpack.c.l.b16 %v84
    %v754 = vpack.c.b16 %v723, %v722
    %v755 = vpack.c.b16 %v725, %v724
    %v756 = vpack.c.b16 %v727, %v726
    %v757 = vpack.c.b16 %v729, %v728
    %v758 = vpack.c.b16 %v731, %v730
    %v759 = vpack.c.b16 %v733, %v732
    %v760 = vpack.c.b16 %v735, %v734
    %v761 = vpack.c.b16 %v737, %v736
    %v762 = vpack.c.b16 %v739, %v738
    %v763 = vpack.c.b16 %v741, %v740
    %v764 = vpack.c.b16 %v743, %v742
    %v765 = vpack.c.b16 %v745, %v744
    %v766 = vpack.c.b16 %v747, %v746
    %v767 = vpack.c.b16 %v749, %v748
    %v768 = vpack.c.b16 %v751, %v750
    %v769 = vpack.c.b16 %v753, %v752
    %v776 = vunpack.c.l.b16 %v86
    %v777 = vunpack.c.l.b16 %v87
    %v778 = vunpack.c.l.b16 %v88
    %v779 = vunpack.c.l.b16 %v89
    %v780 = vunpack.c.l.b16 %v90
    %v781 = vunpack.c.l.b16 %v91
    %v782 = vpack.c.b16 %v777, %v776
    %v783 = vpack.c.b16 %v779, %v778
    %v784 = vpack.c.b16 %v781, %v780
    %v789 = vsel %vm552, %v754, 0
    %v792 = vsel %vm552, %v755, 0
    %v795 = vsel %vm552, %v756, 0
    %v798 = vsel %vm552, %v757, 0
    %v801 = vsel %vm552, %v758, 0
    %v804 = vsel %vm552, %v759, 0
    %v807 = vsel %vm552, %v760, 0
    %v810 = vsel %vm552, %v761, 0
    %v813 = vsel %vm552, %v762, 0
    %v816 = vsel %vm552, %v763, 0
    %v819 = vsel %vm552, %v764, 0
    %v822 = vsel %vm552, %v765, 0
    %v825 = vsel %vm552, %v766, 0
    %v828 = vsel %vm552, %v767, 0
    %v831 = vsel %vm552, %v768, 0
    %v834 = vsel %vm552, %v769, 0
    %836 = vmatpush.bf16.msra.mxu0 0
    %837 = vmatpush.bf16.msra.mxu0 0
    %838 = vmatpush.bf16.msra.mxu0 0
    %839 = vmatpush.bf16.msra.mxu0 0
    %840 = vmatpush.bf16.msra.mxu0 0
    %841 = vmatpush.bf16.msra.mxu0 %v784
    %842 = vmatpush.bf16.msra.mxu0 %v783
    %843 = vmatpush.bf16.msra.mxu0 %v782
    %844 = vmatmul.bf16.gmra.mxu0 %v789
    %v845 = vpop.f32.mrf.mxu0
    %v846 = vadd.f32 %v611, %v845
    %v847 = vpop.f32.mrf.mxu0
    %v848 = vadd.f32 %v613, %v847
    %849 = vmatmul.bf16.gmra.mxu0 %v792
    %v850 = vpop.f32.mrf.mxu0
    %v851 = vadd.f32 %v616, %v850
    %v852 = vpop.f32.mrf.mxu0
    %v853 = vadd.f32 %v618, %v852
    %854 = vmatmul.bf16.gmra.mxu0 %v795
    %v855 = vpop.f32.mrf.mxu0
    %v856 = vadd.f32 %v621, %v855
    %v857 = vpop.f32.mrf.mxu0
    %v858 = vadd.f32 %v623, %v857
    %859 = vmatmul.bf16.gmra.mxu0 %v798
    %v860 = vpop.f32.mrf.mxu0
    %v861 = vadd.f32 %v626, %v860
    %v862 = vpop.f32.mrf.mxu0
    %v863 = vadd.f32 %v628, %v862
    %864 = vmatmul.bf16.gmra.mxu0 %v801
    %v865 = vpop.f32.mrf.mxu0
    %v866 = vadd.f32 %v631, %v865
    %v867 = vpop.f32.mrf.mxu0
    %v868 = vadd.f32 %v633, %v867
    %869 = vmatmul.bf16.gmra.mxu0 %v804
    %v870 = vpop.f32.mrf.mxu0
    %v871 = vadd.f32 %v636, %v870
    %v872 = vpop.f32.mrf.mxu0
    %v873 = vadd.f32 %v638, %v872
    %874 = vmatmul.bf16.gmra.mxu0 %v807
    %v875 = vpop.f32.mrf.mxu0
    %v876 = vadd.f32 %v641, %v875
    %v877 = vpop.f32.mrf.mxu0
    %v878 = vadd.f32 %v643, %v877
    %879 = vmatmul.bf16.gmra.mxu0 %v810
    %v880 = vpop.f32.mrf.mxu0
    %v881 = vadd.f32 %v646, %v880
    %v882 = vpop.f32.mrf.mxu0
    %v883 = vadd.f32 %v648, %v882
    %884 = vmatmul.bf16.gmra.mxu0 %v813
    %v885 = vpop.f32.mrf.mxu0
    %v886 = vadd.f32 %v651, %v885
    %v887 = vpop.f32.mrf.mxu0
    %v888 = vadd.f32 %v653, %v887
    %889 = vmatmul.bf16.gmra.mxu0 %v816
    %v890 = vpop.f32.mrf.mxu0
    %v891 = vadd.f32 %v656, %v890
    %v892 = vpop.f32.mrf.mxu0
    %v893 = vadd.f32 %v658, %v892
    %894 = vmatmul.bf16.gmra.mxu0 %v819
    %v895 = vpop.f32.mrf.mxu0
    %v896 = vadd.f32 %v661, %v895
    %v897 = vpop.f32.mrf.mxu0
    %v898 = vadd.f32 %v663, %v897
    %899 = vmatmul.bf16.gmra.mxu0 %v822
    %v900 = vpop.f32.mrf.mxu0
    %v901 = vadd.f32 %v666, %v900
    %v902 = vpop.f32.mrf.mxu0
    %v903 = vadd.f32 %v668, %v902
    %904 = vmatmul.bf16.gmra.mxu0 %v825
    %v905 = vpop.f32.mrf.mxu0
    %v906 = vadd.f32 %v671, %v905
    %v907 = vpop.f32.mrf.mxu0
    %v908 = vadd.f32 %v673, %v907
    %909 = vmatmul.bf16.gmra.mxu0 %v828
    %v910 = vpop.f32.mrf.mxu0
    %v911 = vadd.f32 %v676, %v910
    %v912 = vpop.f32.mrf.mxu0
    %v913 = vadd.f32 %v678, %v912
    %914 = vmatmul.bf16.gmra.mxu0 %v831
    %v915 = vpop.f32.mrf.mxu0
    %v916 = vadd.f32 %v681, %v915
    %v917 = vpop.f32.mrf.mxu0
    %v918 = vadd.f32 %v683, %v917
    %919 = vmatmul.bf16.gmra.mxu0 %v834
    %v920 = vpop.f32.mrf.mxu0
    %v921 = vadd.f32 %v686, %v920
    %v922 = vpop.f32.mrf.mxu0
    %v923 = vadd.f32 %v688, %v922
    %924 = vdwg.mxu0
    %vm941 = vcmask 1042432
    %vm942 = vcmask 1046532
    %vm943 = vmor %vm941, %vm942
    %v944 = vrot.slane %v38, 5
    %v945 = vrot.slane %v944, 4
    %v946 = vrot.slane %v39, 5
    %v947 = vsel %vm943, %v945, %v946
    %v948 = vrot.slane %v946, 4
    %v949 = vrot.slane %v40, 5
    %v950 = vsel %vm943, %v948, %v949
    %v951 = vrot.slane %v41, 5
    %v952 = vrot.slane %v951, 4
    %v953 = vrot.slane %v42, 5
    %v954 = vsel %vm943, %v952, %v953
    %v955 = vrot.slane %v953, 4
    %v956 = vrot.slane %v43, 5
    %v957 = vsel %vm943, %v955, %v956
    %v958 = vrot.slane %v44, 5
    %v959 = vrot.slane %v958, 4
    %v960 = vrot.slane %v45, 5
    %v961 = vsel %vm943, %v959, %v960
    %v962 = vrot.slane %v960, 4
    %v963 = vrot.slane %v46, 5
    %v964 = vsel %vm943, %v962, %v963
    %v965 = vrot.slane %v47, 5
    %v966 = vrot.slane %v965, 4
    %v967 = vrot.slane %v48, 5
    %v968 = vsel %vm943, %v966, %v967
    %v969 = vrot.slane %v967, 4
    %v970 = vrot.slane %v49, 5
    %v971 = vsel %vm943, %v969, %v970
    %v972 = vrot.slane %v50, 5
    %v973 = vrot.slane %v972, 4
    %v974 = vrot.slane %v51, 5
    %v975 = vsel %vm943, %v973, %v974
    %v976 = vrot.slane %v974, 4
    %v977 = vrot.slane %v52, 5
    %v978 = vsel %vm943, %v976, %v977
    %v979 = vrot.slane %v53, 5
    %v980 = vrot.slane %v979, 4
    %v981 = vrot.slane %v54, 5
    %v982 = vsel %vm943, %v980, %v981
    %v983 = vrot.slane %v981, 4
    %v984 = vrot.slane %v55, 5
    %v985 = vsel %vm943, %v983, %v984
    %v986 = vrot.slane %v56, 5
    %v987 = vrot.slane %v986, 4
    %v988 = vrot.slane %v57, 5
    %v989 = vsel %vm943, %v987, %v988
    %v990 = vrot.slane %v988, 4
    %v991 = vrot.slane %v58, 5
    %v992 = vsel %vm943, %v990, %v991
    %v993 = vrot.slane %v59, 5
    %v994 = vrot.slane %v993, 4
    %v995 = vrot.slane %v60, 5
    %v996 = vsel %vm943, %v994, %v995
    %v997 = vrot.slane %v995, 4
    %v998 = vrot.slane %v61, 5
    %v999 = vsel %vm943, %v997, %v998
    %v1000 = vrot.slane %v62, 5
    %v1001 = vrot.slane %v1000, 4
    %v1002 = vrot.slane %v63, 5
    %v1003 = vsel %vm943, %v1001, %v1002
    %v1004 = vrot.slane %v1002, 4
    %v1005 = vrot.slane %v64, 5
    %v1006 = vsel %vm943, %v1004, %v1005
    %v1007 = vrot.slane %v65, 5
    %v1008 = vrot.slane %v1007, 4
    %v1009 = vrot.slane %v66, 5
    %v1010 = vsel %vm943, %v1008, %v1009
    %v1011 = vrot.slane %v1009, 4
    %v1012 = vrot.slane %v67, 5
    %v1013 = vsel %vm943, %v1011, %v1012
    %v1014 = vrot.slane %v68, 5
    %v1015 = vrot.slane %v1014, 4
    %v1016 = vrot.slane %v69, 5
    %v1017 = vsel %vm943, %v1015, %v1016
    %v1018 = vrot.slane %v1016, 4
    %v1019 = vrot.slane %v70, 5
    %v1020 = vsel %vm943, %v1018, %v1019
    %v1021 = vrot.slane %v71, 5
    %v1022 = vrot.slane %v1021, 4
    %v1023 = vrot.slane %v72, 5
    %v1024 = vsel %vm943, %v1022, %v1023
    %v1025 = vrot.slane %v1023, 4
    %v1026 = vrot.slane %v73, 5
    %v1027 = vsel %vm943, %v1025, %v1026
    %v1028 = vrot.slane %v74, 5
    %v1029 = vrot.slane %v1028, 4
    %v1030 = vrot.slane %v75, 5
    %v1031 = vsel %vm943, %v1029, %v1030
    %v1032 = vrot.slane %v1030, 4
    %v1033 = vrot.slane %v76, 5
    %v1034 = vsel %vm943, %v1032, %v1033
    %v1035 = vrot.slane %v77, 5
    %v1036 = vrot.slane %v1035, 4
    %v1037 = vrot.slane %v78, 5
    %v1038 = vsel %vm943, %v1036, %v1037
    %v1039 = vrot.slane %v1037, 4
    %v1040 = vrot.slane %v79, 5
    %v1041 = vsel %vm943, %v1039, %v1040
    %v1042 = vrot.slane %v80, 5
    %v1043 = vrot.slane %v1042, 4
    %v1044 = vrot.slane %v81, 5
    %v1045 = vsel %vm943, %v1043, %v1044
    %v1046 = vrot.slane %v1044, 4
    %v1047 = vrot.slane %v82, 5
    %v1048 = vsel %vm943, %v1046, %v1047
    %v1049 = vrot.slane %v83, 5
    %v1050 = vrot.slane %v1049, 4
    %v1051 = vrot.slane %v84, 5
    %v1052 = vsel %vm943, %v1050, %v1051
    %v1053 = vrot.slane %v1051, 4
    %v1054 = vrot.slane %v85, 5
    %v1055 = vsel %vm943, %v1053, %v1054
    %s1056 = scalar_lea.vmem %s2, 48
    %v1057 = vld [vmem:[%s1056] sm:$0xf]
    %v1058 = vld [vmem:[%s1056 + $0x4] sm:$0xf]
    %v1059 = vld [vmem:[%s1056 + $0x8] sm:$0xf]
    %v1060 = vld [vmem:[%s1056 + $0xc] sm:$0xf]
    %v1061 = vld [vmem:[%s1056 + $0x10] sm:$0xf]
    %v1062 = vld [vmem:[%s1056 + $0x14] sm:$0xf]
    %v1063 = vunpack.c.l.b16 %v947
    %v1064 = vunpack.c.l.b16 %v950
    %v1065 = vunpack.c.l.b16 %v954
    %v1066 = vunpack.c.l.b16 %v957
    %v1067 = vunpack.c.l.b16 %v961
    %v1068 = vunpack.c.l.b16 %v964
    %v1069 = vunpack.c.l.b16 %v968
    %v1070 = vunpack.c.l.b16 %v971
    %v1071 = vunpack.c.l.b16 %v975
    %v1072 = vunpack.c.l.b16 %v978
    %v1073 = vunpack.c.l.b16 %v982
    %v1074 = vunpack.c.l.b16 %v985
    %v1075 = vunpack.c.l.b16 %v989
    %v1076 = vunpack.c.l.b16 %v992
    %v1077 = vunpack.c.l.b16 %v996
    %v1078 = vunpack.c.l.b16 %v999
    %v1079 = vunpack.c.l.b16 %v1003
    %v1080 = vunpack.c.l.b16 %v1006
    %v1081 = vunpack.c.l.b16 %v1010
    %v1082 = vunpack.c.l.b16 %v1013
    %v1083 = vunpack.c.l.b16 %v1017
    %v1084 = vunpack.c.l.b16 %v1020
    %v1085 = vunpack.c.l.b16 %v1024
    %v1086 = vunpack.c.l.b16 %v1027
    %v1087 = vunpack.c.l.b16 %v1031
    %v1088 = vunpack.c.l.b16 %v1034
    %v1089 = vunpack.c.l.b16 %v1038
    %v1090 = vunpack.c.l.b16 %v1041
    %v1091 = vunpack.c.l.b16 %v1045
    %v1092 = vunpack.c.l.b16 %v1048
    %v1093 = vunpack.c.l.b16 %v1052
    %v1094 = vunpack.c.l.b16 %v1055
    %v1095 = vpack.c.b16 %v1064, %v1063
    %v1096 = vpack.c.b16 %v1066, %v1065
    %v1097 = vpack.c.b16 %v1068, %v1067
    %v1098 = vpack.c.b16 %v1070, %v1069
    %v1099 = vpack.c.b16 %v1072, %v1071
    %v1100 = vpack.c.b16 %v1074, %v1073
    %v1101 = vpack.c.b16 %v1076, %v1075
    %v1102 = vpack.c.b16 %v1078, %v1077
    %v1103 = vpack.c.b16 %v1080, %v1079
    %v1104 = vpack.c.b16 %v1082, %v1081
    %v1105 = vpack.c.b16 %v1084, %v1083
    %v1106 = vpack.c.b16 %v1086, %v1085
    %v1107 = vpack.c.b16 %v1088, %v1087
    %v1108 = vpack.c.b16 %v1090, %v1089
    %v1109 = vpack.c.b16 %v1092, %v1091
    %v1110 = vpack.c.b16 %v1094, %v1093
    %v1117 = vunpack.c.l.b16 %v1057
    %v1118 = vunpack.c.l.b16 %v1058
    %v1119 = vunpack.c.l.b16 %v1059
    %v1120 = vunpack.c.l.b16 %v1060
    %v1121 = vunpack.c.l.b16 %v1061
    %v1122 = vunpack.c.l.b16 %v1062
    %v1123 = vpack.c.b16 %v1118, %v1117
    %v1124 = vpack.c.b16 %v1120, %v1119
    %v1125 = vpack.c.b16 %v1122, %v1121
    %v1130 = vsel %vm552, %v1095, 0
    %v1133 = vsel %vm552, %v1096, 0
    %v1136 = vsel %vm552, %v1097, 0
    %v1139 = vsel %vm552, %v1098, 0
    %v1142 = vsel %vm552, %v1099, 0
    %v1145 = vsel %vm552, %v1100, 0
    %v1148 = vsel %vm552, %v1101, 0
    %v1151 = vsel %vm552, %v1102, 0
    %v1154 = vsel %vm552, %v1103, 0
    %v1157 = vsel %vm552, %v1104, 0
    %v1160 = vsel %vm552, %v1105, 0
    %v1163 = vsel %vm552, %v1106, 0
    %v1166 = vsel %vm552, %v1107, 0
    %v1169 = vsel %vm552, %v1108, 0
    %v1172 = vsel %vm552, %v1109, 0
    %v1175 = vsel %vm552, %v1110, 0
    %1177 = vmatpush.bf16.msra.mxu0 0
    %1178 = vmatpush.bf16.msra.mxu0 0
    %1179 = vmatpush.bf16.msra.mxu0 0
    %1180 = vmatpush.bf16.msra.mxu0 0
    %1181 = vmatpush.bf16.msra.mxu0 0
    %1182 = vmatpush.bf16.msra.mxu0 %v1125
    %1183 = vmatpush.bf16.msra.mxu0 %v1124
    %1184 = vmatpush.bf16.msra.mxu0 %v1123
    %1185 = vmatmul.bf16.gmra.mxu0 %v1130
    %v1186 = vpop.f32.mrf.mxu0
    %v1187 = vadd.f32 0.0, %v1186
    %v1188 = vpop.f32.mrf.mxu0
    %v1189 = vadd.f32 0.0, %v1188
    %1190 = vmatmul.bf16.gmra.mxu0 %v1133
    %v1191 = vpop.f32.mrf.mxu0
    %v1192 = vadd.f32 0.0, %v1191
    %v1193 = vpop.f32.mrf.mxu0
    %v1194 = vadd.f32 0.0, %v1193
    %1195 = vmatmul.bf16.gmra.mxu0 %v1136
    %v1196 = vpop.f32.mrf.mxu0
    %v1197 = vadd.f32 0.0, %v1196
    %v1198 = vpop.f32.mrf.mxu0
    %v1199 = vadd.f32 0.0, %v1198
    %1200 = vmatmul.bf16.gmra.mxu0 %v1139
    %v1201 = vpop.f32.mrf.mxu0
    %v1202 = vadd.f32 0.0, %v1201
    %v1203 = vpop.f32.mrf.mxu0
    %v1204 = vadd.f32 0.0, %v1203
    %1205 = vmatmul.bf16.gmra.mxu0 %v1142
    %v1206 = vpop.f32.mrf.mxu0
    %v1207 = vadd.f32 0.0, %v1206
    %v1208 = vpop.f32.mrf.mxu0
    %v1209 = vadd.f32 0.0, %v1208
    %1210 = vmatmul.bf16.gmra.mxu0 %v1145
    %v1211 = vpop.f32.mrf.mxu0
    %v1212 = vadd.f32 0.0, %v1211
    %v1213 = vpop.f32.mrf.mxu0
    %v1214 = vadd.f32 0.0, %v1213
    %1215 = vmatmul.bf16.gmra.mxu0 %v1148
    %v1216 = vpop.f32.mrf.mxu0
    %v1217 = vadd.f32 0.0, %v1216
    %v1218 = vpop.f32.mrf.mxu0
    %v1219 = vadd.f32 0.0, %v1218
    %1220 = vmatmul.bf16.gmra.mxu0 %v1151
    %v1221 = vpop.f32.mrf.mxu0
    %v1222 = vadd.f32 0.0, %v1221
    %v1223 = vpop.f32.mrf.mxu0
    %v1224 = vadd.f32 0.0, %v1223
    %1225 = vmatmul.bf16.gmra.mxu0 %v1154
    %v1226 = vpop.f32.mrf.mxu0
    %v1227 = vadd.f32 0.0, %v1226
    %v1228 = vpop.f32.mrf.mxu0
    %v1229 = vadd.f32 0.0, %v1228
    %1230 = vmatmul.bf16.gmra.mxu0 %v1157
    %v1231 = vpop.f32.mrf.mxu0
    %v1232 = vadd.f32 0.0, %v1231
    %v1233 = vpop.f32.mrf.mxu0
    %v1234 = vadd.f32 0.0, %v1233
    %1235 = vmatmul.bf16.gmra.mxu0 %v1160
    %v1236 = vpop.f32.mrf.mxu0
    %v1237 = vadd.f32 0.0, %v1236
    %v1238 = vpop.f32.mrf.mxu0
    %v1239 = vadd.f32 0.0, %v1238
    %1240 = vmatmul.bf16.gmra.mxu0 %v1163
    %v1241 = vpop.f32.mrf.mxu0
    %v1242 = vadd.f32 0.0, %v1241
    %v1243 = vpop.f32.mrf.mxu0
    %v1244 = vadd.f32 0.0, %v1243
    %1245 = vmatmul.bf16.gmra.mxu0 %v1166
    %v1246 = vpop.f32.mrf.mxu0
    %v1247 = vadd.f32 0.0, %v1246
    %v1248 = vpop.f32.mrf.mxu0
    %v1249 = vadd.f32 0.0, %v1248
    %1250 = vmatmul.bf16.gmra.mxu0 %v1169
    %v1251 = vpop.f32.mrf.mxu0
    %v1252 = vadd.f32 0.0, %v1251
    %v1253 = vpop.f32.mrf.mxu0
    %v1254 = vadd.f32 0.0, %v1253
    %1255 = vmatmul.bf16.gmra.mxu0 %v1172
    %v1256 = vpop.f32.mrf.mxu0
    %v1257 = vadd.f32 0.0, %v1256
    %v1258 = vpop.f32.mrf.mxu0
    %v1259 = vadd.f32 0.0, %v1258
    %1260 = vmatmul.bf16.gmra.mxu0 %v1175
    %v1261 = vpop.f32.mrf.mxu0
    %v1262 = vadd.f32 0.0, %v1261
    %v1263 = vpop.f32.mrf.mxu0
    %v1264 = vadd.f32 0.0, %v1263
    %1265 = vdwg.mxu0
    %v1266 = vadd.f32 %v846, %v1187
    %v1267 = vadd.f32 %v848, %v1189
    %v1268 = vadd.f32 %v851, %v1192
    %v1269 = vadd.f32 %v853, %v1194
    %v1270 = vadd.f32 %v856, %v1197
    %v1271 = vadd.f32 %v858, %v1199
    %v1272 = vadd.f32 %v861, %v1202
    %v1273 = vadd.f32 %v863, %v1204
    %v1274 = vadd.f32 %v866, %v1207
    %v1275 = vadd.f32 %v868, %v1209
    %v1276 = vadd.f32 %v871, %v1212
    %v1277 = vadd.f32 %v873, %v1214
    %v1278 = vadd.f32 %v876, %v1217
    %v1279 = vadd.f32 %v878, %v1219
    %v1280 = vadd.f32 %v881, %v1222
    %v1281 = vadd.f32 %v883, %v1224
    %v1282 = vadd.f32 %v886, %v1227
    %v1283 = vadd.f32 %v888, %v1229
    %v1284 = vadd.f32 %v891, %v1232
    %v1285 = vadd.f32 %v893, %v1234
    %v1286 = vadd.f32 %v896, %v1237
    %v1287 = vadd.f32 %v898, %v1239
    %v1288 = vadd.f32 %v901, %v1242
    %v1289 = vadd.f32 %v903, %v1244
    %v1290 = vadd.f32 %v906, %v1247
    %v1291 = vadd.f32 %v908, %v1249
    %v1292 = vadd.f32 %v911, %v1252
    %v1293 = vadd.f32 %v913, %v1254
    %v1294 = vadd.f32 %v916, %v1257
    %v1295 = vadd.f32 %v918, %v1259
    %v1296 = vadd.f32 %v921, %v1262
    %v1297 = vadd.f32 %v923, %v1264
    %v1298 = vld [vmem:[%s3] sm:$0x1]
    %v1300 = vperm.slane %v1298, 0
    %v1302 = vadd.f32 %v1266, %v1300
    %v1303 = vadd.f32 %v1267, %v1300
    %v1304 = vadd.f32 %v1268, %v1300
    %v1305 = vadd.f32 %v1269, %v1300
    %v1306 = vadd.f32 %v1270, %v1300
    %v1307 = vadd.f32 %v1271, %v1300
    %v1308 = vadd.f32 %v1272, %v1300
    %v1309 = vadd.f32 %v1273, %v1300
    %v1310 = vadd.f32 %v1274, %v1300
    %v1311 = vadd.f32 %v1275, %v1300
    %v1312 = vadd.f32 %v1276, %v1300
    %v1313 = vadd.f32 %v1277, %v1300
    %v1314 = vadd.f32 %v1278, %v1300
    %v1315 = vadd.f32 %v1279, %v1300
    %v1316 = vadd.f32 %v1280, %v1300
    %v1317 = vadd.f32 %v1281, %v1300
    %v1318 = vadd.f32 %v1282, %v1300
    %v1319 = vadd.f32 %v1283, %v1300
    %v1320 = vadd.f32 %v1284, %v1300
    %v1321 = vadd.f32 %v1285, %v1300
    %v1322 = vadd.f32 %v1286, %v1300
    %v1323 = vadd.f32 %v1287, %v1300
    %v1324 = vadd.f32 %v1288, %v1300
    %v1325 = vadd.f32 %v1289, %v1300
    %v1326 = vadd.f32 %v1290, %v1300
    %v1327 = vadd.f32 %v1291, %v1300
    %v1328 = vadd.f32 %v1292, %v1300
    %v1329 = vadd.f32 %v1293, %v1300
    %v1330 = vadd.f32 %v1294, %v1300
    %v1331 = vadd.f32 %v1295, %v1300
    %v1332 = vadd.f32 %v1296, %v1300
    %v1333 = vadd.f32 %v1297, %v1300
    %v1334 = vlaneseq
    %v1335 = vshrl.u32 %v1334, 7
    %v1336 = vadd.s32 %v1335, 8
    %v1337 = vld [vmem:[%s1] sm:$0x1]
    %v1338 = vld [vmem:[%s1 + $0x1] sm:$0x1]
    %v1339 = vld [vmem:[%s1 + $0x2] sm:$0x1]
    %v1340 = vld [vmem:[%s1 + $0x3] sm:$0x1]
    %v1341 = vld [vmem:[%s1 + $0x4] sm:$0x1]
    %v1342 = vld [vmem:[%s1 + $0x5] sm:$0x1]
    %v1343 = vld [vmem:[%s1 + $0x6] sm:$0x1]
    %v1344 = vld [vmem:[%s1 + $0x7] sm:$0x1]
    %v1345 = vld [vmem:[%s1 + $0x8] sm:$0x1]
    %v1346 = vld [vmem:[%s1 + $0x9] sm:$0x1]
    %v1347 = vld [vmem:[%s1 + $0xa] sm:$0x1]
    %v1348 = vld [vmem:[%s1 + $0xb] sm:$0x1]
    %v1349 = vld [vmem:[%s1 + $0xc] sm:$0x1]
    %v1350 = vld [vmem:[%s1 + $0xd] sm:$0x1]
    %v1351 = vld [vmem:[%s1 + $0xe] sm:$0x1]
    %v1352 = vld [vmem:[%s1 + $0xf] sm:$0x1]
    %v1353 = vperm.slane %v1337, 0
    %v1354 = vperm.slane %v1338, 0
    %v1355 = vperm.slane %v1339, 0
    %v1356 = vperm.slane %v1340, 0
    %v1357 = vperm.slane %v1341, 0
    %v1358 = vperm.slane %v1342, 0
    %v1359 = vperm.slane %v1343, 0
    %v1360 = vperm.slane %v1344, 0
    %v1361 = vperm.slane %v1345, 0
    %v1362 = vperm.slane %v1346, 0
    %v1363 = vperm.slane %v1347, 0
    %v1364 = vperm.slane %v1348, 0
    %v1365 = vperm.slane %v1349, 0
    %v1366 = vperm.slane %v1350, 0
    %v1367 = vperm.slane %v1351, 0
    %v1368 = vperm.slane %v1352, 0
    %1369 = vset.pattern.permute.xlu0 0
    %1370 = vperm.xlu0 %1369, %v1353
    %v1371 = vpop.permute.xlu0 %1370
    %1372 = vset.pattern.permute.xlu0 0
    %1373 = vperm.xlu0 %1372, %v1354
    %v1374 = vpop.permute.xlu0 %1373
    %1375 = vset.pattern.permute.xlu0 0
    %1376 = vperm.xlu0 %1375, %v1355
    %v1377 = vpop.permute.xlu0 %1376
    %1378 = vset.pattern.permute.xlu0 0
    %1379 = vperm.xlu0 %1378, %v1356
    %v1380 = vpop.permute.xlu0 %1379
    %1381 = vset.pattern.permute.xlu0 0
    %1382 = vperm.xlu0 %1381, %v1357
    %v1383 = vpop.permute.xlu0 %1382
    %1384 = vset.pattern.permute.xlu0 0
    %1385 = vperm.xlu0 %1384, %v1358
    %v1386 = vpop.permute.xlu0 %1385
    %1387 = vset.pattern.permute.xlu0 0
    %1388 = vperm.xlu0 %1387, %v1359
    %v1389 = vpop.permute.xlu0 %1388
    %1390 = vset.pattern.permute.xlu0 0
    %1391 = vperm.xlu0 %1390, %v1360
    %v1392 = vpop.permute.xlu0 %1391
    %1393 = vset.pattern.permute.xlu0 0
    %1394 = vperm.xlu0 %1393, %v1361
    %v1395 = vpop.permute.xlu0 %1394
    %1396 = vset.pattern.permute.xlu0 0
    %1397 = vperm.xlu0 %1396, %v1362
    %v1398 = vpop.permute.xlu0 %1397
    %1399 = vset.pattern.permute.xlu0 0
    %1400 = vperm.xlu0 %1399, %v1363
    %v1401 = vpop.permute.xlu0 %1400
    %1402 = vset.pattern.permute.xlu0 0
    %1403 = vperm.xlu0 %1402, %v1364
    %v1404 = vpop.permute.xlu0 %1403
    %1405 = vset.pattern.permute.xlu0 0
    %1406 = vperm.xlu0 %1405, %v1365
    %v1407 = vpop.permute.xlu0 %1406
    %1408 = vset.pattern.permute.xlu0 0
    %1409 = vperm.xlu0 %1408, %v1366
    %v1410 = vpop.permute.xlu0 %1409
    %1411 = vset.pattern.permute.xlu0 0
    %1412 = vperm.xlu0 %1411, %v1367
    %v1413 = vpop.permute.xlu0 %1412
    %1414 = vset.pattern.permute.xlu0 0
    %1415 = vperm.xlu0 %1414, %v1368
    %v1416 = vpop.permute.xlu0 %1415
    %vm1417 = vcmp.ge.s32.totalorder %v1335, %v1371
    %vm1418 = vcmp.ge.s32.totalorder %v1336, %v1371
    %vm1419 = vcmp.ge.s32.totalorder %v1335, %v1374
    %vm1420 = vcmp.ge.s32.totalorder %v1336, %v1374
    %vm1421 = vcmp.ge.s32.totalorder %v1335, %v1377
    %vm1422 = vcmp.ge.s32.totalorder %v1336, %v1377
    %vm1423 = vcmp.ge.s32.totalorder %v1335, %v1380
    %vm1424 = vcmp.ge.s32.totalorder %v1336, %v1380
    %vm1425 = vcmp.ge.s32.totalorder %v1335, %v1383
    %vm1426 = vcmp.ge.s32.totalorder %v1336, %v1383
    %vm1427 = vcmp.ge.s32.totalorder %v1335, %v1386
    %vm1428 = vcmp.ge.s32.totalorder %v1336, %v1386
    %vm1429 = vcmp.ge.s32.totalorder %v1335, %v1389
    %vm1430 = vcmp.ge.s32.totalorder %v1336, %v1389
    %vm1431 = vcmp.ge.s32.totalorder %v1335, %v1392
    %vm1432 = vcmp.ge.s32.totalorder %v1336, %v1392
    %vm1433 = vcmp.ge.s32.totalorder %v1335, %v1395
    %vm1434 = vcmp.ge.s32.totalorder %v1336, %v1395
    %vm1435 = vcmp.ge.s32.totalorder %v1335, %v1398
    %vm1436 = vcmp.ge.s32.totalorder %v1336, %v1398
    %vm1437 = vcmp.ge.s32.totalorder %v1335, %v1401
    %vm1438 = vcmp.ge.s32.totalorder %v1336, %v1401
    %vm1439 = vcmp.ge.s32.totalorder %v1335, %v1404
    %vm1440 = vcmp.ge.s32.totalorder %v1336, %v1404
    %vm1441 = vcmp.ge.s32.totalorder %v1335, %v1407
    %vm1442 = vcmp.ge.s32.totalorder %v1336, %v1407
    %vm1443 = vcmp.ge.s32.totalorder %v1335, %v1410
    %vm1444 = vcmp.ge.s32.totalorder %v1336, %v1410
    %vm1445 = vcmp.ge.s32.totalorder %v1335, %v1413
    %vm1446 = vcmp.ge.s32.totalorder %v1336, %v1413
    %vm1447 = vcmp.ge.s32.totalorder %v1335, %v1416
    %vm1448 = vcmp.ge.s32.totalorder %v1336, %v1416
    %1449 = vset.pattern.permute.xlu0 1
    %1450 = vperm.xlu0 %1449, %v1353
    %v1451 = vpop.permute.xlu0 %1450
    %1452 = vset.pattern.permute.xlu0 1
    %1453 = vperm.xlu0 %1452, %v1354
    %v1454 = vpop.permute.xlu0 %1453
    %1455 = vset.pattern.permute.xlu0 1
    %1456 = vperm.xlu0 %1455, %v1355
    %v1457 = vpop.permute.xlu0 %1456
    %1458 = vset.pattern.permute.xlu0 1
    %1459 = vperm.xlu0 %1458, %v1356
    %v1460 = vpop.permute.xlu0 %1459
    %1461 = vset.pattern.permute.xlu0 1
    %1462 = vperm.xlu0 %1461, %v1357
    %v1463 = vpop.permute.xlu0 %1462
    %1464 = vset.pattern.permute.xlu0 1
    %1465 = vperm.xlu0 %1464, %v1358
    %v1466 = vpop.permute.xlu0 %1465
    %1467 = vset.pattern.permute.xlu0 1
    %1468 = vperm.xlu0 %1467, %v1359
    %v1469 = vpop.permute.xlu0 %1468
    %1470 = vset.pattern.permute.xlu0 1
    %1471 = vperm.xlu0 %1470, %v1360
    %v1472 = vpop.permute.xlu0 %1471
    %1473 = vset.pattern.permute.xlu0 1
    %1474 = vperm.xlu0 %1473, %v1361
    %v1475 = vpop.permute.xlu0 %1474
    %1476 = vset.pattern.permute.xlu0 1
    %1477 = vperm.xlu0 %1476, %v1362
    %v1478 = vpop.permute.xlu0 %1477
    %1479 = vset.pattern.permute.xlu0 1
    %1480 = vperm.xlu0 %1479, %v1363
    %v1481 = vpop.permute.xlu0 %1480
    %1482 = vset.pattern.permute.xlu0 1
    %1483 = vperm.xlu0 %1482, %v1364
    %v1484 = vpop.permute.xlu0 %1483
    %1485 = vset.pattern.permute.xlu0 1
    %1486 = vperm.xlu0 %1485, %v1365
    %v1487 = vpop.permute.xlu0 %1486
    %1488 = vset.pattern.permute.xlu0 1
    %1489 = vperm.xlu0 %1488, %v1366
    %v1490 = vpop.permute.xlu0 %1489
    %1491 = vset.pattern.permute.xlu0 1
    %1492 = vperm.xlu0 %1491, %v1367
    %v1493 = vpop.permute.xlu0 %1492
    %1494 = vset.pattern.permute.xlu0 1
    %1495 = vperm.xlu0 %1494, %v1368
    %v1496 = vpop.permute.xlu0 %1495
    %vm1497 = vcmp.lt.s32.totalorder %v1335, %v1451
    %vm1498 = vcmp.lt.s32.totalorder %v1336, %v1451
    %vm1499 = vcmp.lt.s32.totalorder %v1335, %v1454
    %vm1500 = vcmp.lt.s32.totalorder %v1336, %v1454
    %vm1501 = vcmp.lt.s32.totalorder %v1335, %v1457
    %vm1502 = vcmp.lt.s32.totalorder %v1336, %v1457
    %vm1503 = vcmp.lt.s32.totalorder %v1335, %v1460
    %vm1504 = vcmp.lt.s32.totalorder %v1336, %v1460
    %vm1505 = vcmp.lt.s32.totalorder %v1335, %v1463
    %vm1506 = vcmp.lt.s32.totalorder %v1336, %v1463
    %vm1507 = vcmp.lt.s32.totalorder %v1335, %v1466
    %vm1508 = vcmp.lt.s32.totalorder %v1336, %v1466
    %vm1509 = vcmp.lt.s32.totalorder %v1335, %v1469
    %vm1510 = vcmp.lt.s32.totalorder %v1336, %v1469
    %vm1511 = vcmp.lt.s32.totalorder %v1335, %v1472
    %vm1512 = vcmp.lt.s32.totalorder %v1336, %v1472
    %vm1513 = vcmp.lt.s32.totalorder %v1335, %v1475
    %vm1514 = vcmp.lt.s32.totalorder %v1336, %v1475
    %vm1515 = vcmp.lt.s32.totalorder %v1335, %v1478
    %vm1516 = vcmp.lt.s32.totalorder %v1336, %v1478
    %vm1517 = vcmp.lt.s32.totalorder %v1335, %v1481
    %vm1518 = vcmp.lt.s32.totalorder %v1336, %v1481
    %vm1519 = vcmp.lt.s32.totalorder %v1335, %v1484
    %vm1520 = vcmp.lt.s32.totalorder %v1336, %v1484
    %vm1521 = vcmp.lt.s32.totalorder %v1335, %v1487
    %vm1522 = vcmp.lt.s32.totalorder %v1336, %v1487
    %vm1523 = vcmp.lt.s32.totalorder %v1335, %v1490
    %vm1524 = vcmp.lt.s32.totalorder %v1336, %v1490
    %vm1525 = vcmp.lt.s32.totalorder %v1335, %v1493
    %vm1526 = vcmp.lt.s32.totalorder %v1336, %v1493
    %vm1527 = vcmp.lt.s32.totalorder %v1335, %v1496
    %vm1528 = vcmp.lt.s32.totalorder %v1336, %v1496
    %vm1529 = vmand %vm1417, %vm1497
    %vm1530 = vmand %vm1418, %vm1498
    %vm1531 = vmand %vm1419, %vm1499
    %vm1532 = vmand %vm1420, %vm1500
    %vm1533 = vmand %vm1421, %vm1501
    %vm1534 = vmand %vm1422, %vm1502
    %vm1535 = vmand %vm1423, %vm1503
    %vm1536 = vmand %vm1424, %vm1504
    %vm1537 = vmand %vm1425, %vm1505
    %vm1538 = vmand %vm1426, %vm1506
    %vm1539 = vmand %vm1427, %vm1507
    %vm1540 = vmand %vm1428, %vm1508
    %vm1541 = vmand %vm1429, %vm1509
    %vm1542 = vmand %vm1430, %vm1510
    %vm1543 = vmand %vm1431, %vm1511
    %vm1544 = vmand %vm1432, %vm1512
    %vm1545 = vmand %vm1433, %vm1513
    %vm1546 = vmand %vm1434, %vm1514
    %vm1547 = vmand %vm1435, %vm1515
    %vm1548 = vmand %vm1436, %vm1516
    %vm1549 = vmand %vm1437, %vm1517
    %vm1550 = vmand %vm1438, %vm1518
    %vm1551 = vmand %vm1439, %vm1519
    %vm1552 = vmand %vm1440, %vm1520
    %vm1553 = vmand %vm1441, %vm1521
    %vm1554 = vmand %vm1442, %vm1522
    %vm1555 = vmand %vm1443, %vm1523
    %vm1556 = vmand %vm1444, %vm1524
    %vm1557 = vmand %vm1445, %vm1525
    %vm1558 = vmand %vm1446, %vm1526
    %vm1559 = vmand %vm1447, %vm1527
    %vm1560 = vmand %vm1448, %vm1528
    %v1561 = vsel %vm1529, %v1302, 0.0
    %v1562 = vsel %vm1530, %v1303, 0.0
    %v1563 = vsel %vm1531, %v1304, 0.0
    %v1564 = vsel %vm1532, %v1305, 0.0
    %v1565 = vsel %vm1533, %v1306, 0.0
    %v1566 = vsel %vm1534, %v1307, 0.0
    %v1567 = vsel %vm1535, %v1308, 0.0
    %v1568 = vsel %vm1536, %v1309, 0.0
    %v1569 = vsel %vm1537, %v1310, 0.0
    %v1570 = vsel %vm1538, %v1311, 0.0
    %v1571 = vsel %vm1539, %v1312, 0.0
    %v1572 = vsel %vm1540, %v1313, 0.0
    %v1573 = vsel %vm1541, %v1314, 0.0
    %v1574 = vsel %vm1542, %v1315, 0.0
    %v1575 = vsel %vm1543, %v1316, 0.0
    %v1576 = vsel %vm1544, %v1317, 0.0
    %v1577 = vsel %vm1545, %v1318, 0.0
    %v1578 = vsel %vm1546, %v1319, 0.0
    %v1579 = vsel %vm1547, %v1320, 0.0
    %v1580 = vsel %vm1548, %v1321, 0.0
    %v1581 = vsel %vm1549, %v1322, 0.0
    %v1582 = vsel %vm1550, %v1323, 0.0
    %v1583 = vsel %vm1551, %v1324, 0.0
    %v1584 = vsel %vm1552, %v1325, 0.0
    %v1585 = vsel %vm1553, %v1326, 0.0
    %v1586 = vsel %vm1554, %v1327, 0.0
    %v1587 = vsel %vm1555, %v1328, 0.0
    %v1588 = vsel %vm1556, %v1329, 0.0
    %v1589 = vsel %vm1557, %v1330, 0.0
    %v1590 = vsel %vm1558, %v1331, 0.0
    %v1591 = vsel %vm1559, %v1332, 0.0
    %v1592 = vsel %vm1560, %v1333, 0.0
    %vm1593 = vcmask 261120
    %v1594 = vsel %vm1593, %v1561, -inf
    %v1595 = vsel %vm1593, %v1562, -inf
    %v1596 = vmax.f32 %v1594, %v1595
    %v1597 = vrot.slane %v1596, 4
    %v1598 = vmax.f32 %v1596, %v1597
    %v1599 = vrot.slane %v1598, 2
    %v1600 = vmax.f32 %v1598, %v1599
    %v1601 = vrot.slane %v1600, 1
    %v1602 = vmax.f32 %v1600, %v1601
    %v1603 = vsel %vm1593, %v1563, -inf
    %v1604 = vsel %vm1593, %v1564, -inf
    %v1605 = vmax.f32 %v1603, %v1604
    %v1606 = vrot.slane %v1605, 4
    %v1607 = vmax.f32 %v1605, %v1606
    %v1608 = vrot.slane %v1607, 2
    %v1609 = vmax.f32 %v1607, %v1608
    %v1610 = vrot.slane %v1609, 1
    %v1611 = vmax.f32 %v1609, %v1610
    %v1612 = vsel %vm1593, %v1565, -inf
    %v1613 = vsel %vm1593, %v1566, -inf
    %v1614 = vmax.f32 %v1612, %v1613
    %v1615 = vrot.slane %v1614, 4
    %v1616 = vmax.f32 %v1614, %v1615
    %v1617 = vrot.slane %v1616, 2
    %v1618 = vmax.f32 %v1616, %v1617
    %v1619 = vrot.slane %v1618, 1
    %v1620 = vmax.f32 %v1618, %v1619
    %v1621 = vsel %vm1593, %v1567, -inf
    %v1622 = vsel %vm1593, %v1568, -inf
    %v1623 = vmax.f32 %v1621, %v1622
    %v1624 = vrot.slane %v1623, 4
    %v1625 = vmax.f32 %v1623, %v1624
    %v1626 = vrot.slane %v1625, 2
    %v1627 = vmax.f32 %v1625, %v1626
    %v1628 = vrot.slane %v1627, 1
    %v1629 = vmax.f32 %v1627, %v1628
    %v1630 = vsel %vm1593, %v1569, -inf
    %v1631 = vsel %vm1593, %v1570, -inf
    %v1632 = vmax.f32 %v1630, %v1631
    %v1633 = vrot.slane %v1632, 4
    %v1634 = vmax.f32 %v1632, %v1633
    %v1635 = vrot.slane %v1634, 2
    %v1636 = vmax.f32 %v1634, %v1635
    %v1637 = vrot.slane %v1636, 1
    %v1638 = vmax.f32 %v1636, %v1637
    %v1639 = vsel %vm1593, %v1571, -inf
    %v1640 = vsel %vm1593, %v1572, -inf
    %v1641 = vmax.f32 %v1639, %v1640
    %v1642 = vrot.slane %v1641, 4
    %v1643 = vmax.f32 %v1641, %v1642
    %v1644 = vrot.slane %v1643, 2
    %v1645 = vmax.f32 %v1643, %v1644
    %v1646 = vrot.slane %v1645, 1
    %v1647 = vmax.f32 %v1645, %v1646
    %v1648 = vsel %vm1593, %v1573, -inf
    %v1649 = vsel %vm1593, %v1574, -inf
    %v1650 = vmax.f32 %v1648, %v1649
    %v1651 = vrot.slane %v1650, 4
    %v1652 = vmax.f32 %v1650, %v1651
    %v1653 = vrot.slane %v1652, 2
    %v1654 = vmax.f32 %v1652, %v1653
    %v1655 = vrot.slane %v1654, 1
    %v1656 = vmax.f32 %v1654, %v1655
    %v1657 = vsel %vm1593, %v1575, -inf
    %v1658 = vsel %vm1593, %v1576, -inf
    %v1659 = vmax.f32 %v1657, %v1658
    %v1660 = vrot.slane %v1659, 4
    %v1661 = vmax.f32 %v1659, %v1660
    %v1662 = vrot.slane %v1661, 2
    %v1663 = vmax.f32 %v1661, %v1662
    %v1664 = vrot.slane %v1663, 1
    %v1665 = vmax.f32 %v1663, %v1664
    %v1666 = vsel %vm1593, %v1577, -inf
    %v1667 = vsel %vm1593, %v1578, -inf
    %v1668 = vmax.f32 %v1666, %v1667
    %v1669 = vrot.slane %v1668, 4
    %v1670 = vmax.f32 %v1668, %v1669
    %v1671 = vrot.slane %v1670, 2
    %v1672 = vmax.f32 %v1670, %v1671
    %v1673 = vrot.slane %v1672, 1
    %v1674 = vmax.f32 %v1672, %v1673
    %v1675 = vsel %vm1593, %v1579, -inf
    %v1676 = vsel %vm1593, %v1580, -inf
    %v1677 = vmax.f32 %v1675, %v1676
    %v1678 = vrot.slane %v1677, 4
    %v1679 = vmax.f32 %v1677, %v1678
    %v1680 = vrot.slane %v1679, 2
    %v1681 = vmax.f32 %v1679, %v1680
    %v1682 = vrot.slane %v1681, 1
    %v1683 = vmax.f32 %v1681, %v1682
    %v1684 = vsel %vm1593, %v1581, -inf
    %v1685 = vsel %vm1593, %v1582, -inf
    %v1686 = vmax.f32 %v1684, %v1685
    %v1687 = vrot.slane %v1686, 4
    %v1688 = vmax.f32 %v1686, %v1687
    %v1689 = vrot.slane %v1688, 2
    %v1690 = vmax.f32 %v1688, %v1689
    %v1691 = vrot.slane %v1690, 1
    %v1692 = vmax.f32 %v1690, %v1691
    %v1693 = vsel %vm1593, %v1583, -inf
    %v1694 = vsel %vm1593, %v1584, -inf
    %v1695 = vmax.f32 %v1693, %v1694
    %v1696 = vrot.slane %v1695, 4
    %v1697 = vmax.f32 %v1695, %v1696
    %v1698 = vrot.slane %v1697, 2
    %v1699 = vmax.f32 %v1697, %v1698
    %v1700 = vrot.slane %v1699, 1
    %v1701 = vmax.f32 %v1699, %v1700
    %v1702 = vsel %vm1593, %v1585, -inf
    %v1703 = vsel %vm1593, %v1586, -inf
    %v1704 = vmax.f32 %v1702, %v1703
    %v1705 = vrot.slane %v1704, 4
    %v1706 = vmax.f32 %v1704, %v1705
    %v1707 = vrot.slane %v1706, 2
    %v1708 = vmax.f32 %v1706, %v1707
    %v1709 = vrot.slane %v1708, 1
    %v1710 = vmax.f32 %v1708, %v1709
    %v1711 = vsel %vm1593, %v1587, -inf
    %v1712 = vsel %vm1593, %v1588, -inf
    %v1713 = vmax.f32 %v1711, %v1712
    %v1714 = vrot.slane %v1713, 4
    %v1715 = vmax.f32 %v1713, %v1714
    %v1716 = vrot.slane %v1715, 2
    %v1717 = vmax.f32 %v1715, %v1716
    %v1718 = vrot.slane %v1717, 1
    %v1719 = vmax.f32 %v1717, %v1718
    %v1720 = vsel %vm1593, %v1589, -inf
    %v1721 = vsel %vm1593, %v1590, -inf
    %v1722 = vmax.f32 %v1720, %v1721
    %v1723 = vrot.slane %v1722, 4
    %v1724 = vmax.f32 %v1722, %v1723
    %v1725 = vrot.slane %v1724, 2
    %v1726 = vmax.f32 %v1724, %v1725
    %v1727 = vrot.slane %v1726, 1
    %v1728 = vmax.f32 %v1726, %v1727
    %v1729 = vsel %vm1593, %v1591, -inf
    %v1730 = vsel %vm1593, %v1592, -inf
    %v1731 = vmax.f32 %v1729, %v1730
    %v1732 = vrot.slane %v1731, 4
    %v1733 = vmax.f32 %v1731, %v1732
    %v1734 = vrot.slane %v1733, 2
    %v1735 = vmax.f32 %v1733, %v1734
    %v1736 = vrot.slane %v1735, 1
    %v1737 = vmax.f32 %v1735, %v1736
    %v1738 = vmax.f32 %v1602, 0.0
    %v1739 = vmax.f32 %v1611, 0.0
    %v1740 = vmax.f32 %v1620, 0.0
    %v1741 = vmax.f32 %v1629, 0.0
    %v1742 = vmax.f32 %v1638, 0.0
    %v1743 = vmax.f32 %v1647, 0.0
    %v1744 = vmax.f32 %v1656, 0.0
    %v1745 = vmax.f32 %v1665, 0.0
    %v1746 = vmax.f32 %v1674, 0.0
    %v1747 = vmax.f32 %v1683, 0.0
    %v1748 = vmax.f32 %v1692, 0.0
    %v1749 = vmax.f32 %v1701, 0.0
    %v1750 = vmax.f32 %v1710, 0.0
    %v1751 = vmax.f32 %v1719, 0.0
    %v1752 = vmax.f32 %v1728, 0.0
    %v1753 = vmax.f32 %v1737, 0.0
    %v1754 = vpack.c.bf16 %v1738, %v1738
    %v1755 = vpack.c.bf16 %v1739, %v1739
    %v1756 = vpack.c.bf16 %v1740, %v1740
    %v1757 = vpack.c.bf16 %v1741, %v1741
    %v1758 = vpack.c.bf16 %v1742, %v1742
    %v1759 = vpack.c.bf16 %v1743, %v1743
    %v1760 = vpack.c.bf16 %v1744, %v1744
    %v1761 = vpack.c.bf16 %v1745, %v1745
    %v1762 = vpack.c.bf16 %v1746, %v1746
    %v1763 = vpack.c.bf16 %v1747, %v1747
    %v1764 = vpack.c.bf16 %v1748, %v1748
    %v1765 = vpack.c.bf16 %v1749, %v1749
    %v1766 = vpack.c.bf16 %v1750, %v1750
    %v1767 = vpack.c.bf16 %v1751, %v1751
    %v1768 = vpack.c.bf16 %v1752, %v1752
    %v1769 = vpack.c.bf16 %v1753, %v1753
    %v1770 = vld [vmem:[%s4] sm:$0xf]
    %v1771 = vld [vmem:[%s4 + $0x4] sm:$0xf]
    %v1772 = vld [vmem:[%s4 + $0x8] sm:$0xf]
    %v1773 = vld [vmem:[%s4 + $0xc] sm:$0xf]
    %1774 = vset.pattern.permute.xlu0 2
    %1775 = vperm.xlu0 %1774, %v1353
    %v1776 = vpop.permute.xlu0 %1775
    %1777 = vset.pattern.permute.xlu0 2
    %1778 = vperm.xlu0 %1777, %v1354
    %v1779 = vpop.permute.xlu0 %1778
    %1780 = vset.pattern.permute.xlu0 2
    %1781 = vperm.xlu0 %1780, %v1355
    %v1782 = vpop.permute.xlu0 %1781
    %1783 = vset.pattern.permute.xlu0 2
    %1784 = vperm.xlu0 %1783, %v1356
    %v1785 = vpop.permute.xlu0 %1784
    %1786 = vset.pattern.permute.xlu0 2
    %1787 = vperm.xlu0 %1786, %v1357
    %v1788 = vpop.permute.xlu0 %1787
    %1789 = vset.pattern.permute.xlu0 2
    %1790 = vperm.xlu0 %1789, %v1358
    %v1791 = vpop.permute.xlu0 %1790
    %1792 = vset.pattern.permute.xlu0 2
    %1793 = vperm.xlu0 %1792, %v1359
    %v1794 = vpop.permute.xlu0 %1793
    %1795 = vset.pattern.permute.xlu0 2
    %1796 = vperm.xlu0 %1795, %v1360
    %v1797 = vpop.permute.xlu0 %1796
    %1798 = vset.pattern.permute.xlu0 2
    %1799 = vperm.xlu0 %1798, %v1361
    %v1800 = vpop.permute.xlu0 %1799
    %1801 = vset.pattern.permute.xlu0 2
    %1802 = vperm.xlu0 %1801, %v1362
    %v1803 = vpop.permute.xlu0 %1802
    %1804 = vset.pattern.permute.xlu0 2
    %1805 = vperm.xlu0 %1804, %v1363
    %v1806 = vpop.permute.xlu0 %1805
    %1807 = vset.pattern.permute.xlu0 2
    %1808 = vperm.xlu0 %1807, %v1364
    %v1809 = vpop.permute.xlu0 %1808
    %1810 = vset.pattern.permute.xlu0 2
    %1811 = vperm.xlu0 %1810, %v1365
    %v1812 = vpop.permute.xlu0 %1811
    %1813 = vset.pattern.permute.xlu0 2
    %1814 = vperm.xlu0 %1813, %v1366
    %v1815 = vpop.permute.xlu0 %1814
    %1816 = vset.pattern.permute.xlu0 2
    %1817 = vperm.xlu0 %1816, %v1367
    %v1818 = vpop.permute.xlu0 %1817
    %1819 = vset.pattern.permute.xlu0 2
    %1820 = vperm.xlu0 %1819, %v1368
    %v1821 = vpop.permute.xlu0 %1820
    %vm1822 = vcmp.ge.s32.totalorder %v1335, %v1776
    %vm1823 = vcmp.ge.s32.totalorder %v1336, %v1776
    %vm1824 = vcmp.ge.s32.totalorder %v1335, %v1779
    %vm1825 = vcmp.ge.s32.totalorder %v1336, %v1779
    %vm1826 = vcmp.ge.s32.totalorder %v1335, %v1782
    %vm1827 = vcmp.ge.s32.totalorder %v1336, %v1782
    %vm1828 = vcmp.ge.s32.totalorder %v1335, %v1785
    %vm1829 = vcmp.ge.s32.totalorder %v1336, %v1785
    %vm1830 = vcmp.ge.s32.totalorder %v1335, %v1788
    %vm1831 = vcmp.ge.s32.totalorder %v1336, %v1788
    %vm1832 = vcmp.ge.s32.totalorder %v1335, %v1791
    %vm1833 = vcmp.ge.s32.totalorder %v1336, %v1791
    %vm1834 = vcmp.ge.s32.totalorder %v1335, %v1794
    %vm1835 = vcmp.ge.s32.totalorder %v1336, %v1794
    %vm1836 = vcmp.ge.s32.totalorder %v1335, %v1797
    %vm1837 = vcmp.ge.s32.totalorder %v1336, %v1797
    %vm1838 = vcmp.ge.s32.totalorder %v1335, %v1800
    %vm1839 = vcmp.ge.s32.totalorder %v1336, %v1800
    %vm1840 = vcmp.ge.s32.totalorder %v1335, %v1803
    %vm1841 = vcmp.ge.s32.totalorder %v1336, %v1803
    %vm1842 = vcmp.ge.s32.totalorder %v1335, %v1806
    %vm1843 = vcmp.ge.s32.totalorder %v1336, %v1806
    %vm1844 = vcmp.ge.s32.totalorder %v1335, %v1809
    %vm1845 = vcmp.ge.s32.totalorder %v1336, %v1809
    %vm1846 = vcmp.ge.s32.totalorder %v1335, %v1812
    %vm1847 = vcmp.ge.s32.totalorder %v1336, %v1812
    %vm1848 = vcmp.ge.s32.totalorder %v1335, %v1815
    %vm1849 = vcmp.ge.s32.totalorder %v1336, %v1815
    %vm1850 = vcmp.ge.s32.totalorder %v1335, %v1818
    %vm1851 = vcmp.ge.s32.totalorder %v1336, %v1818
    %vm1852 = vcmp.ge.s32.totalorder %v1335, %v1821
    %vm1853 = vcmp.ge.s32.totalorder %v1336, %v1821
    %1854 = vset.pattern.permute.xlu0 3
    %1855 = vperm.xlu0 %1854, %v1353
    %v1856 = vpop.permute.xlu0 %1855
    %1857 = vset.pattern.permute.xlu0 3
    %1858 = vperm.xlu0 %1857, %v1354
    %v1859 = vpop.permute.xlu0 %1858
    %1860 = vset.pattern.permute.xlu0 3
    %1861 = vperm.xlu0 %1860, %v1355
    %v1862 = vpop.permute.xlu0 %1861
    %1863 = vset.pattern.permute.xlu0 3
    %1864 = vperm.xlu0 %1863, %v1356
    %v1865 = vpop.permute.xlu0 %1864
    %1866 = vset.pattern.permute.xlu0 3
    %1867 = vperm.xlu0 %1866, %v1357
    %v1868 = vpop.permute.xlu0 %1867
    %1869 = vset.pattern.permute.xlu0 3
    %1870 = vperm.xlu0 %1869, %v1358
    %v1871 = vpop.permute.xlu0 %1870
    %1872 = vset.pattern.permute.xlu0 3
    %1873 = vperm.xlu0 %1872, %v1359
    %v1874 = vpop.permute.xlu0 %1873
    %1875 = vset.pattern.permute.xlu0 3
    %1876 = vperm.xlu0 %1875, %v1360
    %v1877 = vpop.permute.xlu0 %1876
    %1878 = vset.pattern.permute.xlu0 3
    %1879 = vperm.xlu0 %1878, %v1361
    %v1880 = vpop.permute.xlu0 %1879
    %1881 = vset.pattern.permute.xlu0 3
    %1882 = vperm.xlu0 %1881, %v1362
    %v1883 = vpop.permute.xlu0 %1882
    %1884 = vset.pattern.permute.xlu0 3
    %1885 = vperm.xlu0 %1884, %v1363
    %v1886 = vpop.permute.xlu0 %1885
    %1887 = vset.pattern.permute.xlu0 3
    %1888 = vperm.xlu0 %1887, %v1364
    %v1889 = vpop.permute.xlu0 %1888
    %1890 = vset.pattern.permute.xlu0 3
    %1891 = vperm.xlu0 %1890, %v1365
    %v1892 = vpop.permute.xlu0 %1891
    %1893 = vset.pattern.permute.xlu0 3
    %1894 = vperm.xlu0 %1893, %v1366
    %v1895 = vpop.permute.xlu0 %1894
    %1896 = vset.pattern.permute.xlu0 3
    %1897 = vperm.xlu0 %1896, %v1367
    %v1898 = vpop.permute.xlu0 %1897
    %1899 = vset.pattern.permute.xlu0 3
    %1900 = vperm.xlu0 %1899, %v1368
    %v1901 = vpop.permute.xlu0 %1900
    %vm1902 = vcmp.lt.s32.totalorder %v1335, %v1856
    %vm1903 = vcmp.lt.s32.totalorder %v1336, %v1856
    %vm1904 = vcmp.lt.s32.totalorder %v1335, %v1859
    %vm1905 = vcmp.lt.s32.totalorder %v1336, %v1859
    %vm1906 = vcmp.lt.s32.totalorder %v1335, %v1862
    %vm1907 = vcmp.lt.s32.totalorder %v1336, %v1862
    %vm1908 = vcmp.lt.s32.totalorder %v1335, %v1865
    %vm1909 = vcmp.lt.s32.totalorder %v1336, %v1865
    %vm1910 = vcmp.lt.s32.totalorder %v1335, %v1868
    %vm1911 = vcmp.lt.s32.totalorder %v1336, %v1868
    %vm1912 = vcmp.lt.s32.totalorder %v1335, %v1871
    %vm1913 = vcmp.lt.s32.totalorder %v1336, %v1871
    %vm1914 = vcmp.lt.s32.totalorder %v1335, %v1874
    %vm1915 = vcmp.lt.s32.totalorder %v1336, %v1874
    %vm1916 = vcmp.lt.s32.totalorder %v1335, %v1877
    %vm1917 = vcmp.lt.s32.totalorder %v1336, %v1877
    %vm1918 = vcmp.lt.s32.totalorder %v1335, %v1880
    %vm1919 = vcmp.lt.s32.totalorder %v1336, %v1880
    %vm1920 = vcmp.lt.s32.totalorder %v1335, %v1883
    %vm1921 = vcmp.lt.s32.totalorder %v1336, %v1883
    %vm1922 = vcmp.lt.s32.totalorder %v1335, %v1886
    %vm1923 = vcmp.lt.s32.totalorder %v1336, %v1886
    %vm1924 = vcmp.lt.s32.totalorder %v1335, %v1889
    %vm1925 = vcmp.lt.s32.totalorder %v1336, %v1889
    %vm1926 = vcmp.lt.s32.totalorder %v1335, %v1892
    %vm1927 = vcmp.lt.s32.totalorder %v1336, %v1892
    %vm1928 = vcmp.lt.s32.totalorder %v1335, %v1895
    %vm1929 = vcmp.lt.s32.totalorder %v1336, %v1895
    %vm1930 = vcmp.lt.s32.totalorder %v1335, %v1898
    %vm1931 = vcmp.lt.s32.totalorder %v1336, %v1898
    %vm1932 = vcmp.lt.s32.totalorder %v1335, %v1901
    %vm1933 = vcmp.lt.s32.totalorder %v1336, %v1901
    %vm1934 = vmand %vm1822, %vm1902
    %vm1935 = vmand %vm1823, %vm1903
    %vm1936 = vmand %vm1824, %vm1904
    %vm1937 = vmand %vm1825, %vm1905
    %vm1938 = vmand %vm1826, %vm1906
    %vm1939 = vmand %vm1827, %vm1907
    %vm1940 = vmand %vm1828, %vm1908
    %vm1941 = vmand %vm1829, %vm1909
    %vm1942 = vmand %vm1830, %vm1910
    %vm1943 = vmand %vm1831, %vm1911
    %vm1944 = vmand %vm1832, %vm1912
    %vm1945 = vmand %vm1833, %vm1913
    %vm1946 = vmand %vm1834, %vm1914
    %vm1947 = vmand %vm1835, %vm1915
    %vm1948 = vmand %vm1836, %vm1916
    %vm1949 = vmand %vm1837, %vm1917
    %vm1950 = vmand %vm1838, %vm1918
    %vm1951 = vmand %vm1839, %vm1919
    %vm1952 = vmand %vm1840, %vm1920
    %vm1953 = vmand %vm1841, %vm1921
    %vm1954 = vmand %vm1842, %vm1922
    %vm1955 = vmand %vm1843, %vm1923
    %vm1956 = vmand %vm1844, %vm1924
    %vm1957 = vmand %vm1845, %vm1925
    %vm1958 = vmand %vm1846, %vm1926
    %vm1959 = vmand %vm1847, %vm1927
    %vm1960 = vmand %vm1848, %vm1928
    %vm1961 = vmand %vm1849, %vm1929
    %vm1962 = vmand %vm1850, %vm1930
    %vm1963 = vmand %vm1851, %vm1931
    %vm1964 = vmand %vm1852, %vm1932
    %vm1965 = vmand %vm1853, %vm1933
    %v1966 = vsel %vm1934, %v1302, 0.0
    %v1967 = vsel %vm1935, %v1303, 0.0
    %v1968 = vsel %vm1936, %v1304, 0.0
    %v1969 = vsel %vm1937, %v1305, 0.0
    %v1970 = vsel %vm1938, %v1306, 0.0
    %v1971 = vsel %vm1939, %v1307, 0.0
    %v1972 = vsel %vm1940, %v1308, 0.0
    %v1973 = vsel %vm1941, %v1309, 0.0
    %v1974 = vsel %vm1942, %v1310, 0.0
    %v1975 = vsel %vm1943, %v1311, 0.0
    %v1976 = vsel %vm1944, %v1312, 0.0
    %v1977 = vsel %vm1945, %v1313, 0.0
    %v1978 = vsel %vm1946, %v1314, 0.0
    %v1979 = vsel %vm1947, %v1315, 0.0
    %v1980 = vsel %vm1948, %v1316, 0.0
    %v1981 = vsel %vm1949, %v1317, 0.0
    %v1982 = vsel %vm1950, %v1318, 0.0
    %v1983 = vsel %vm1951, %v1319, 0.0
    %v1984 = vsel %vm1952, %v1320, 0.0
    %v1985 = vsel %vm1953, %v1321, 0.0
    %v1986 = vsel %vm1954, %v1322, 0.0
    %v1987 = vsel %vm1955, %v1323, 0.0
    %v1988 = vsel %vm1956, %v1324, 0.0
    %v1989 = vsel %vm1957, %v1325, 0.0
    %v1990 = vsel %vm1958, %v1326, 0.0
    %v1991 = vsel %vm1959, %v1327, 0.0
    %v1992 = vsel %vm1960, %v1328, 0.0
    %v1993 = vsel %vm1961, %v1329, 0.0
    %v1994 = vsel %vm1962, %v1330, 0.0
    %v1995 = vsel %vm1963, %v1331, 0.0
    %v1996 = vsel %vm1964, %v1332, 0.0
    %v1997 = vsel %vm1965, %v1333, 0.0
    %v1998 = vsel %vm1593, %v1966, -inf
    %v1999 = vsel %vm1593, %v1967, -inf
    %v2000 = vmax.f32 %v1998, %v1999
    %v2001 = vrot.slane %v2000, 4
    %v2002 = vmax.f32 %v2000, %v2001
    %v2003 = vrot.slane %v2002, 2
    %v2004 = vmax.f32 %v2002, %v2003
    %v2005 = vrot.slane %v2004, 1
    %v2006 = vmax.f32 %v2004, %v2005
    %v2007 = vsel %vm1593, %v1968, -inf
    %v2008 = vsel %vm1593, %v1969, -inf
    %v2009 = vmax.f32 %v2007, %v2008
    %v2010 = vrot.slane %v2009, 4
    %v2011 = vmax.f32 %v2009, %v2010
    %v2012 = vrot.slane %v2011, 2
    %v2013 = vmax.f32 %v2011, %v2012
    %v2014 = vrot.slane %v2013, 1
    %v2015 = vmax.f32 %v2013, %v2014
    %v2016 = vsel %vm1593, %v1970, -inf
    %v2017 = vsel %vm1593, %v1971, -inf
    %v2018 = vmax.f32 %v2016, %v2017
    %v2019 = vrot.slane %v2018, 4
    %v2020 = vmax.f32 %v2018, %v2019
    %v2021 = vrot.slane %v2020, 2
    %v2022 = vmax.f32 %v2020, %v2021
    %v2023 = vrot.slane %v2022, 1
    %v2024 = vmax.f32 %v2022, %v2023
    %v2025 = vsel %vm1593, %v1972, -inf
    %v2026 = vsel %vm1593, %v1973, -inf
    %v2027 = vmax.f32 %v2025, %v2026
    %v2028 = vrot.slane %v2027, 4
    %v2029 = vmax.f32 %v2027, %v2028
    %v2030 = vrot.slane %v2029, 2
    %v2031 = vmax.f32 %v2029, %v2030
    %v2032 = vrot.slane %v2031, 1
    %v2033 = vmax.f32 %v2031, %v2032
    %v2034 = vsel %vm1593, %v1974, -inf
    %v2035 = vsel %vm1593, %v1975, -inf
    %v2036 = vmax.f32 %v2034, %v2035
    %v2037 = vrot.slane %v2036, 4
    %v2038 = vmax.f32 %v2036, %v2037
    %v2039 = vrot.slane %v2038, 2
    %v2040 = vmax.f32 %v2038, %v2039
    %v2041 = vrot.slane %v2040, 1
    %v2042 = vmax.f32 %v2040, %v2041
    %v2043 = vsel %vm1593, %v1976, -inf
    %v2044 = vsel %vm1593, %v1977, -inf
    %v2045 = vmax.f32 %v2043, %v2044
    %v2046 = vrot.slane %v2045, 4
    %v2047 = vmax.f32 %v2045, %v2046
    %v2048 = vrot.slane %v2047, 2
    %v2049 = vmax.f32 %v2047, %v2048
    %v2050 = vrot.slane %v2049, 1
    %v2051 = vmax.f32 %v2049, %v2050
    %v2052 = vsel %vm1593, %v1978, -inf
    %v2053 = vsel %vm1593, %v1979, -inf
    %v2054 = vmax.f32 %v2052, %v2053
    %v2055 = vrot.slane %v2054, 4
    %v2056 = vmax.f32 %v2054, %v2055
    %v2057 = vrot.slane %v2056, 2
    %v2058 = vmax.f32 %v2056, %v2057
    %v2059 = vrot.slane %v2058, 1
    %v2060 = vmax.f32 %v2058, %v2059
    %v2061 = vsel %vm1593, %v1980, -inf
    %v2062 = vsel %vm1593, %v1981, -inf
    %v2063 = vmax.f32 %v2061, %v2062
    %v2064 = vrot.slane %v2063, 4
    %v2065 = vmax.f32 %v2063, %v2064
    %v2066 = vrot.slane %v2065, 2
    %v2067 = vmax.f32 %v2065, %v2066
    %v2068 = vrot.slane %v2067, 1
    %v2069 = vmax.f32 %v2067, %v2068
    %v2070 = vsel %vm1593, %v1982, -inf
    %v2071 = vsel %vm1593, %v1983, -inf
    %v2072 = vmax.f32 %v2070, %v2071
    %v2073 = vrot.slane %v2072, 4
    %v2074 = vmax.f32 %v2072, %v2073
    %v2075 = vrot.slane %v2074, 2
    %v2076 = vmax.f32 %v2074, %v2075
    %v2077 = vrot.slane %v2076, 1
    %v2078 = vmax.f32 %v2076, %v2077
    %v2079 = vsel %vm1593, %v1984, -inf
    %v2080 = vsel %vm1593, %v1985, -inf
    %v2081 = vmax.f32 %v2079, %v2080
    %v2082 = vrot.slane %v2081, 4
    %v2083 = vmax.f32 %v2081, %v2082
    %v2084 = vrot.slane %v2083, 2
    %v2085 = vmax.f32 %v2083, %v2084
    %v2086 = vrot.slane %v2085, 1
    %v2087 = vmax.f32 %v2085, %v2086
    %v2088 = vsel %vm1593, %v1986, -inf
    %v2089 = vsel %vm1593, %v1987, -inf
    %v2090 = vmax.f32 %v2088, %v2089
    %v2091 = vrot.slane %v2090, 4
    %v2092 = vmax.f32 %v2090, %v2091
    %v2093 = vrot.slane %v2092, 2
    %v2094 = vmax.f32 %v2092, %v2093
    %v2095 = vrot.slane %v2094, 1
    %v2096 = vmax.f32 %v2094, %v2095
    %v2097 = vsel %vm1593, %v1988, -inf
    %v2098 = vsel %vm1593, %v1989, -inf
    %v2099 = vmax.f32 %v2097, %v2098
    %v2100 = vrot.slane %v2099, 4
    %v2101 = vmax.f32 %v2099, %v2100
    %v2102 = vrot.slane %v2101, 2
    %v2103 = vmax.f32 %v2101, %v2102
    %v2104 = vrot.slane %v2103, 1
    %v2105 = vmax.f32 %v2103, %v2104
    %v2106 = vsel %vm1593, %v1990, -inf
    %v2107 = vsel %vm1593, %v1991, -inf
    %v2108 = vmax.f32 %v2106, %v2107
    %v2109 = vrot.slane %v2108, 4
    %v2110 = vmax.f32 %v2108, %v2109
    %v2111 = vrot.slane %v2110, 2
    %v2112 = vmax.f32 %v2110, %v2111
    %v2113 = vrot.slane %v2112, 1
    %v2114 = vmax.f32 %v2112, %v2113
    %v2115 = vsel %vm1593, %v1992, -inf
    %v2116 = vsel %vm1593, %v1993, -inf
    %v2117 = vmax.f32 %v2115, %v2116
    %v2118 = vrot.slane %v2117, 4
    %v2119 = vmax.f32 %v2117, %v2118
    %v2120 = vrot.slane %v2119, 2
    %v2121 = vmax.f32 %v2119, %v2120
    %v2122 = vrot.slane %v2121, 1
    %v2123 = vmax.f32 %v2121, %v2122
    %v2124 = vsel %vm1593, %v1994, -inf
    %v2125 = vsel %vm1593, %v1995, -inf
    %v2126 = vmax.f32 %v2124, %v2125
    %v2127 = vrot.slane %v2126, 4
    %v2128 = vmax.f32 %v2126, %v2127
    %v2129 = vrot.slane %v2128, 2
    %v2130 = vmax.f32 %v2128, %v2129
    %v2131 = vrot.slane %v2130, 1
    %v2132 = vmax.f32 %v2130, %v2131
    %v2133 = vsel %vm1593, %v1996, -inf
    %v2134 = vsel %vm1593, %v1997, -inf
    %v2135 = vmax.f32 %v2133, %v2134
    %v2136 = vrot.slane %v2135, 4
    %v2137 = vmax.f32 %v2135, %v2136
    %v2138 = vrot.slane %v2137, 2
    %v2139 = vmax.f32 %v2137, %v2138
    %v2140 = vrot.slane %v2139, 1
    %v2141 = vmax.f32 %v2139, %v2140
    %v2142 = vmax.f32 %v2006, 0.0
    %v2143 = vmax.f32 %v2015, 0.0
    %v2144 = vmax.f32 %v2024, 0.0
    %v2145 = vmax.f32 %v2033, 0.0
    %v2146 = vmax.f32 %v2042, 0.0
    %v2147 = vmax.f32 %v2051, 0.0
    %v2148 = vmax.f32 %v2060, 0.0
    %v2149 = vmax.f32 %v2069, 0.0
    %v2150 = vmax.f32 %v2078, 0.0
    %v2151 = vmax.f32 %v2087, 0.0
    %v2152 = vmax.f32 %v2096, 0.0
    %v2153 = vmax.f32 %v2105, 0.0
    %v2154 = vmax.f32 %v2114, 0.0
    %v2155 = vmax.f32 %v2123, 0.0
    %v2156 = vmax.f32 %v2132, 0.0
    %v2157 = vmax.f32 %v2141, 0.0
    %v2158 = vpack.c.bf16 %v2142, %v2142
    %v2159 = vpack.c.bf16 %v2143, %v2143
    %v2160 = vpack.c.bf16 %v2144, %v2144
    %v2161 = vpack.c.bf16 %v2145, %v2145
    %v2162 = vpack.c.bf16 %v2146, %v2146
    %v2163 = vpack.c.bf16 %v2147, %v2147
    %v2164 = vpack.c.bf16 %v2148, %v2148
    %v2165 = vpack.c.bf16 %v2149, %v2149
    %v2166 = vpack.c.bf16 %v2150, %v2150
    %v2167 = vpack.c.bf16 %v2151, %v2151
    %v2168 = vpack.c.bf16 %v2152, %v2152
    %v2169 = vpack.c.bf16 %v2153, %v2153
    %v2170 = vpack.c.bf16 %v2154, %v2154
    %v2171 = vpack.c.bf16 %v2155, %v2155
    %v2172 = vpack.c.bf16 %v2156, %v2156
    %v2173 = vpack.c.bf16 %v2157, %v2157
    %s2174 = scalar_lea.vmem %s4, 16
    %v2175 = vld [vmem:[%s2174] sm:$0xf]
    %v2176 = vld [vmem:[%s2174 + $0x4] sm:$0xf]
    %v2177 = vld [vmem:[%s2174 + $0x8] sm:$0xf]
    %v2178 = vld [vmem:[%s2174 + $0xc] sm:$0xf]
    %v2195 = vunpack.c.l.b16 %v2158
    %v2196 = vunpack.c.l.b16 %v2159
    %v2197 = vunpack.c.l.b16 %v2160
    %v2198 = vunpack.c.l.b16 %v2161
    %v2199 = vunpack.c.l.b16 %v2162
    %v2200 = vunpack.c.l.b16 %v2163
    %v2201 = vunpack.c.l.b16 %v2164
    %v2202 = vunpack.c.l.b16 %v2165
    %v2203 = vunpack.c.l.b16 %v2166
    %v2204 = vunpack.c.l.b16 %v2167
    %v2205 = vunpack.c.l.b16 %v2168
    %v2206 = vunpack.c.l.b16 %v2169
    %v2207 = vunpack.c.l.b16 %v2170
    %v2208 = vunpack.c.l.b16 %v2171
    %v2209 = vunpack.c.l.b16 %v2172
    %v2210 = vunpack.c.l.b16 %v2173
    %vm2211 = vcmask 1041409
    %v2212 = vsel %vm2211, %v2196, %v2195
    %vm2213 = vcmask 1042434
    %v2214 = vsel %vm2213, %v2197, %v2212
    %vm2215 = vcmask 1043459
    %v2216 = vsel %vm2215, %v2198, %v2214
    %vm2217 = vcmask 1044484
    %v2218 = vsel %vm2217, %v2199, %v2216
    %vm2219 = vcmask 1045509
    %v2220 = vsel %vm2219, %v2200, %v2218
    %vm2221 = vcmask 1046534
    %v2222 = vsel %vm2221, %v2201, %v2220
    %vm2223 = vcmask 1047559
    %v2224 = vsel %vm2223, %v2202, %v2222
    %v2225 = vsel %vm2211, %v2204, %v2203
    %v2226 = vsel %vm2213, %v2205, %v2225
    %v2227 = vsel %vm2215, %v2206, %v2226
    %v2228 = vsel %vm2217, %v2207, %v2227
    %v2229 = vsel %vm2219, %v2208, %v2228
    %v2230 = vsel %vm2221, %v2209, %v2229
    %v2231 = vsel %vm2223, %v2210, %v2230
    %v2232 = vpack.c.b16 %v2231, %v2224
    %v2237 = vunpack.c.l.b16 %v2175
    %v2238 = vunpack.c.l.b16 %v2176
    %v2239 = vunpack.c.l.b16 %v2177
    %v2240 = vunpack.c.l.b16 %v2178
    %v2241 = vpack.c.b16 %v2238, %v2237
    %v2242 = vpack.c.b16 %v2240, %v2239
    %v2246 = vsel %vm1593, %v2232, 0
    %2248 = vmatpush.bf16.msra.mxu0 0
    %2249 = vmatpush.bf16.msra.mxu0 0
    %2250 = vmatpush.bf16.msra.mxu0 0
    %2251 = vmatpush.bf16.msra.mxu0 0
    %2252 = vmatpush.bf16.msra.mxu0 0
    %2253 = vmatpush.bf16.msra.mxu0 0
    %2254 = vmatpush.bf16.msra.mxu0 %v2242
    %2255 = vmatpush.bf16.msra.mxu0 %v2241
    %2256 = vmatmul.bf16.gmra.mxu0 %v2246
    %v2257 = vpop.f32.mrf.mxu0
    %v2258 = vadd.f32 0.0, %v2257
    %v2259 = vpop.f32.mrf.mxu0
    %v2260 = vadd.f32 0.0, %v2259
    %2261 = vdwg.mxu0
    %v2278 = vunpack.c.l.b16 %v1754
    %v2279 = vunpack.c.l.b16 %v1755
    %v2280 = vunpack.c.l.b16 %v1756
    %v2281 = vunpack.c.l.b16 %v1757
    %v2282 = vunpack.c.l.b16 %v1758
    %v2283 = vunpack.c.l.b16 %v1759
    %v2284 = vunpack.c.l.b16 %v1760
    %v2285 = vunpack.c.l.b16 %v1761
    %v2286 = vunpack.c.l.b16 %v1762
    %v2287 = vunpack.c.l.b16 %v1763
    %v2288 = vunpack.c.l.b16 %v1764
    %v2289 = vunpack.c.l.b16 %v1765
    %v2290 = vunpack.c.l.b16 %v1766
    %v2291 = vunpack.c.l.b16 %v1767
    %v2292 = vunpack.c.l.b16 %v1768
    %v2293 = vunpack.c.l.b16 %v1769
    %v2294 = vsel %vm2211, %v2279, %v2278
    %v2295 = vsel %vm2213, %v2280, %v2294
    %v2296 = vsel %vm2215, %v2281, %v2295
    %v2297 = vsel %vm2217, %v2282, %v2296
    %v2298 = vsel %vm2219, %v2283, %v2297
    %v2299 = vsel %vm2221, %v2284, %v2298
    %v2300 = vsel %vm2223, %v2285, %v2299
    %v2301 = vsel %vm2211, %v2287, %v2286
    %v2302 = vsel %vm2213, %v2288, %v2301
    %v2303 = vsel %vm2215, %v2289, %v2302
    %v2304 = vsel %vm2217, %v2290, %v2303
    %v2305 = vsel %vm2219, %v2291, %v2304
    %v2306 = vsel %vm2221, %v2292, %v2305
    %v2307 = vsel %vm2223, %v2293, %v2306
    %v2308 = vpack.c.b16 %v2307, %v2300
    %v2313 = vunpack.c.l.b16 %v1770
    %v2314 = vunpack.c.l.b16 %v1771
    %v2315 = vunpack.c.l.b16 %v1772
    %v2316 = vunpack.c.l.b16 %v1773
    %v2317 = vpack.c.b16 %v2314, %v2313
    %v2318 = vpack.c.b16 %v2316, %v2315
    %v2322 = vsel %vm1593, %v2308, 0
    %2324 = vmatpush.bf16.msra.mxu0 0
    %2325 = vmatpush.bf16.msra.mxu0 0
    %2326 = vmatpush.bf16.msra.mxu0 0
    %2327 = vmatpush.bf16.msra.mxu0 0
    %2328 = vmatpush.bf16.msra.mxu0 0
    %2329 = vmatpush.bf16.msra.mxu0 0
    %2330 = vmatpush.bf16.msra.mxu0 %v2318
    %2331 = vmatpush.bf16.msra.mxu0 %v2317
    %2332 = vmatmul.bf16.gmra.mxu0 %v2322
    %v2333 = vpop.f32.mrf.mxu0
    %v2334 = vadd.f32 %v2258, %v2333
    %v2335 = vpop.f32.mrf.mxu0
    %v2336 = vadd.f32 %v2260, %v2335
    %2337 = vdwg.mxu0
    %2338 = vset.pattern.permute.xlu0 4
    %2339 = vperm.xlu0 %2338, %v1353
    %v2340 = vpop.permute.xlu0 %2339
    %2341 = vset.pattern.permute.xlu0 4
    %2342 = vperm.xlu0 %2341, %v1354
    %v2343 = vpop.permute.xlu0 %2342
    %2344 = vset.pattern.permute.xlu0 4
    %2345 = vperm.xlu0 %2344, %v1355
    %v2346 = vpop.permute.xlu0 %2345
    %2347 = vset.pattern.permute.xlu0 4
    %2348 = vperm.xlu0 %2347, %v1356
    %v2349 = vpop.permute.xlu0 %2348
    %2350 = vset.pattern.permute.xlu0 4
    %2351 = vperm.xlu0 %2350, %v1357
    %v2352 = vpop.permute.xlu0 %2351
    %2353 = vset.pattern.permute.xlu0 4
    %2354 = vperm.xlu0 %2353, %v1358
    %v2355 = vpop.permute.xlu0 %2354
    %2356 = vset.pattern.permute.xlu0 4
    %2357 = vperm.xlu0 %2356, %v1359
    %v2358 = vpop.permute.xlu0 %2357
    %2359 = vset.pattern.permute.xlu0 4
    %2360 = vperm.xlu0 %2359, %v1360
    %v2361 = vpop.permute.xlu0 %2360
    %2362 = vset.pattern.permute.xlu0 4
    %2363 = vperm.xlu0 %2362, %v1361
    %v2364 = vpop.permute.xlu0 %2363
    %2365 = vset.pattern.permute.xlu0 4
    %2366 = vperm.xlu0 %2365, %v1362
    %v2367 = vpop.permute.xlu0 %2366
    %2368 = vset.pattern.permute.xlu0 4
    %2369 = vperm.xlu0 %2368, %v1363
    %v2370 = vpop.permute.xlu0 %2369
    %2371 = vset.pattern.permute.xlu0 4
    %2372 = vperm.xlu0 %2371, %v1364
    %v2373 = vpop.permute.xlu0 %2372
    %2374 = vset.pattern.permute.xlu0 4
    %2375 = vperm.xlu0 %2374, %v1365
    %v2376 = vpop.permute.xlu0 %2375
    %2377 = vset.pattern.permute.xlu0 4
    %2378 = vperm.xlu0 %2377, %v1366
    %v2379 = vpop.permute.xlu0 %2378
    %2380 = vset.pattern.permute.xlu0 4
    %2381 = vperm.xlu0 %2380, %v1367
    %v2382 = vpop.permute.xlu0 %2381
    %2383 = vset.pattern.permute.xlu0 4
    %2384 = vperm.xlu0 %2383, %v1368
    %v2385 = vpop.permute.xlu0 %2384
    %vm2386 = vcmp.ge.s32.totalorder %v1335, %v2340
    %vm2387 = vcmp.ge.s32.totalorder %v1336, %v2340
    %vm2388 = vcmp.ge.s32.totalorder %v1335, %v2343
    %vm2389 = vcmp.ge.s32.totalorder %v1336, %v2343
    %vm2390 = vcmp.ge.s32.totalorder %v1335, %v2346
    %vm2391 = vcmp.ge.s32.totalorder %v1336, %v2346
    %vm2392 = vcmp.ge.s32.totalorder %v1335, %v2349
    %vm2393 = vcmp.ge.s32.totalorder %v1336, %v2349
    %vm2394 = vcmp.ge.s32.totalorder %v1335, %v2352
    %vm2395 = vcmp.ge.s32.totalorder %v1336, %v2352
    %vm2396 = vcmp.ge.s32.totalorder %v1335, %v2355
    %vm2397 = vcmp.ge.s32.totalorder %v1336, %v2355
    %vm2398 = vcmp.ge.s32.totalorder %v1335, %v2358
    %vm2399 = vcmp.ge.s32.totalorder %v1336, %v2358
    %vm2400 = vcmp.ge.s32.totalorder %v1335, %v2361
    %vm2401 = vcmp.ge.s32.totalorder %v1336, %v2361
    %vm2402 = vcmp.ge.s32.totalorder %v1335, %v2364
    %vm2403 = vcmp.ge.s32.totalorder %v1336, %v2364
    %vm2404 = vcmp.ge.s32.totalorder %v1335, %v2367
    %vm2405 = vcmp.ge.s32.totalorder %v1336, %v2367
    %vm2406 = vcmp.ge.s32.totalorder %v1335, %v2370
    %vm2407 = vcmp.ge.s32.totalorder %v1336, %v2370
    %vm2408 = vcmp.ge.s32.totalorder %v1335, %v2373
    %vm2409 = vcmp.ge.s32.totalorder %v1336, %v2373
    %vm2410 = vcmp.ge.s32.totalorder %v1335, %v2376
    %vm2411 = vcmp.ge.s32.totalorder %v1336, %v2376
    %vm2412 = vcmp.ge.s32.totalorder %v1335, %v2379
    %vm2413 = vcmp.ge.s32.totalorder %v1336, %v2379
    %vm2414 = vcmp.ge.s32.totalorder %v1335, %v2382
    %vm2415 = vcmp.ge.s32.totalorder %v1336, %v2382
    %vm2416 = vcmp.ge.s32.totalorder %v1335, %v2385
    %vm2417 = vcmp.ge.s32.totalorder %v1336, %v2385
    %2418 = vset.pattern.permute.xlu0 5
    %2419 = vperm.xlu0 %2418, %v1353
    %v2420 = vpop.permute.xlu0 %2419
    %2421 = vset.pattern.permute.xlu0 5
    %2422 = vperm.xlu0 %2421, %v1354
    %v2423 = vpop.permute.xlu0 %2422
    %2424 = vset.pattern.permute.xlu0 5
    %2425 = vperm.xlu0 %2424, %v1355
    %v2426 = vpop.permute.xlu0 %2425
    %2427 = vset.pattern.permute.xlu0 5
    %2428 = vperm.xlu0 %2427, %v1356
    %v2429 = vpop.permute.xlu0 %2428
    %2430 = vset.pattern.permute.xlu0 5
    %2431 = vperm.xlu0 %2430, %v1357
    %v2432 = vpop.permute.xlu0 %2431
    %2433 = vset.pattern.permute.xlu0 5
    %2434 = vperm.xlu0 %2433, %v1358
    %v2435 = vpop.permute.xlu0 %2434
    %2436 = vset.pattern.permute.xlu0 5
    %2437 = vperm.xlu0 %2436, %v1359
    %v2438 = vpop.permute.xlu0 %2437
    %2439 = vset.pattern.permute.xlu0 5
    %2440 = vperm.xlu0 %2439, %v1360
    %v2441 = vpop.permute.xlu0 %2440
    %2442 = vset.pattern.permute.xlu0 5
    %2443 = vperm.xlu0 %2442, %v1361
    %v2444 = vpop.permute.xlu0 %2443
    %2445 = vset.pattern.permute.xlu0 5
    %2446 = vperm.xlu0 %2445, %v1362
    %v2447 = vpop.permute.xlu0 %2446
    %2448 = vset.pattern.permute.xlu0 5
    %2449 = vperm.xlu0 %2448, %v1363
    %v2450 = vpop.permute.xlu0 %2449
    %2451 = vset.pattern.permute.xlu0 5
    %2452 = vperm.xlu0 %2451, %v1364
    %v2453 = vpop.permute.xlu0 %2452
    %2454 = vset.pattern.permute.xlu0 5
    %2455 = vperm.xlu0 %2454, %v1365
    %v2456 = vpop.permute.xlu0 %2455
    %2457 = vset.pattern.permute.xlu0 5
    %2458 = vperm.xlu0 %2457, %v1366
    %v2459 = vpop.permute.xlu0 %2458
    %2460 = vset.pattern.permute.xlu0 5
    %2461 = vperm.xlu0 %2460, %v1367
    %v2462 = vpop.permute.xlu0 %2461
    %2463 = vset.pattern.permute.xlu0 5
    %2464 = vperm.xlu0 %2463, %v1368
    %v2465 = vpop.permute.xlu0 %2464
    %vm2466 = vcmp.lt.s32.totalorder %v1335, %v2420
    %vm2467 = vcmp.lt.s32.totalorder %v1336, %v2420
    %vm2468 = vcmp.lt.s32.totalorder %v1335, %v2423
    %vm2469 = vcmp.lt.s32.totalorder %v1336, %v2423
    %vm2470 = vcmp.lt.s32.totalorder %v1335, %v2426
    %vm2471 = vcmp.lt.s32.totalorder %v1336, %v2426
    %vm2472 = vcmp.lt.s32.totalorder %v1335, %v2429
    %vm2473 = vcmp.lt.s32.totalorder %v1336, %v2429
    %vm2474 = vcmp.lt.s32.totalorder %v1335, %v2432
    %vm2475 = vcmp.lt.s32.totalorder %v1336, %v2432
    %vm2476 = vcmp.lt.s32.totalorder %v1335, %v2435
    %vm2477 = vcmp.lt.s32.totalorder %v1336, %v2435
    %vm2478 = vcmp.lt.s32.totalorder %v1335, %v2438
    %vm2479 = vcmp.lt.s32.totalorder %v1336, %v2438
    %vm2480 = vcmp.lt.s32.totalorder %v1335, %v2441
    %vm2481 = vcmp.lt.s32.totalorder %v1336, %v2441
    %vm2482 = vcmp.lt.s32.totalorder %v1335, %v2444
    %vm2483 = vcmp.lt.s32.totalorder %v1336, %v2444
    %vm2484 = vcmp.lt.s32.totalorder %v1335, %v2447
    %vm2485 = vcmp.lt.s32.totalorder %v1336, %v2447
    %vm2486 = vcmp.lt.s32.totalorder %v1335, %v2450
    %vm2487 = vcmp.lt.s32.totalorder %v1336, %v2450
    %vm2488 = vcmp.lt.s32.totalorder %v1335, %v2453
    %vm2489 = vcmp.lt.s32.totalorder %v1336, %v2453
    %vm2490 = vcmp.lt.s32.totalorder %v1335, %v2456
    %vm2491 = vcmp.lt.s32.totalorder %v1336, %v2456
    %vm2492 = vcmp.lt.s32.totalorder %v1335, %v2459
    %vm2493 = vcmp.lt.s32.totalorder %v1336, %v2459
    %vm2494 = vcmp.lt.s32.totalorder %v1335, %v2462
    %vm2495 = vcmp.lt.s32.totalorder %v1336, %v2462
    %vm2496 = vcmp.lt.s32.totalorder %v1335, %v2465
    %vm2497 = vcmp.lt.s32.totalorder %v1336, %v2465
    %vm2498 = vmand %vm2386, %vm2466
    %vm2499 = vmand %vm2387, %vm2467
    %vm2500 = vmand %vm2388, %vm2468
    %vm2501 = vmand %vm2389, %vm2469
    %vm2502 = vmand %vm2390, %vm2470
    %vm2503 = vmand %vm2391, %vm2471
    %vm2504 = vmand %vm2392, %vm2472
    %vm2505 = vmand %vm2393, %vm2473
    %vm2506 = vmand %vm2394, %vm2474
    %vm2507 = vmand %vm2395, %vm2475
    %vm2508 = vmand %vm2396, %vm2476
    %vm2509 = vmand %vm2397, %vm2477
    %vm2510 = vmand %vm2398, %vm2478
    %vm2511 = vmand %vm2399, %vm2479
    %vm2512 = vmand %vm2400, %vm2480
    %vm2513 = vmand %vm2401, %vm2481
    %vm2514 = vmand %vm2402, %vm2482
    %vm2515 = vmand %vm2403, %vm2483
    %vm2516 = vmand %vm2404, %vm2484
    %vm2517 = vmand %vm2405, %vm2485
    %vm2518 = vmand %vm2406, %vm2486
    %vm2519 = vmand %vm2407, %vm2487
    %vm2520 = vmand %vm2408, %vm2488
    %vm2521 = vmand %vm2409, %vm2489
    %vm2522 = vmand %vm2410, %vm2490
    %vm2523 = vmand %vm2411, %vm2491
    %vm2524 = vmand %vm2412, %vm2492
    %vm2525 = vmand %vm2413, %vm2493
    %vm2526 = vmand %vm2414, %vm2494
    %vm2527 = vmand %vm2415, %vm2495
    %vm2528 = vmand %vm2416, %vm2496
    %vm2529 = vmand %vm2417, %vm2497
    %v2530 = vsel %vm2498, %v1302, 0.0
    %v2531 = vsel %vm2499, %v1303, 0.0
    %v2532 = vsel %vm2500, %v1304, 0.0
    %v2533 = vsel %vm2501, %v1305, 0.0
    %v2534 = vsel %vm2502, %v1306, 0.0
    %v2535 = vsel %vm2503, %v1307, 0.0
    %v2536 = vsel %vm2504, %v1308, 0.0
    %v2537 = vsel %vm2505, %v1309, 0.0
    %v2538 = vsel %vm2506, %v1310, 0.0
    %v2539 = vsel %vm2507, %v1311, 0.0
    %v2540 = vsel %vm2508, %v1312, 0.0
    %v2541 = vsel %vm2509, %v1313, 0.0
    %v2542 = vsel %vm2510, %v1314, 0.0
    %v2543 = vsel %vm2511, %v1315, 0.0
    %v2544 = vsel %vm2512, %v1316, 0.0
    %v2545 = vsel %vm2513, %v1317, 0.0
    %v2546 = vsel %vm2514, %v1318, 0.0
    %v2547 = vsel %vm2515, %v1319, 0.0
    %v2548 = vsel %vm2516, %v1320, 0.0
    %v2549 = vsel %vm2517, %v1321, 0.0
    %v2550 = vsel %vm2518, %v1322, 0.0
    %v2551 = vsel %vm2519, %v1323, 0.0
    %v2552 = vsel %vm2520, %v1324, 0.0
    %v2553 = vsel %vm2521, %v1325, 0.0
    %v2554 = vsel %vm2522, %v1326, 0.0
    %v2555 = vsel %vm2523, %v1327, 0.0
    %v2556 = vsel %vm2524, %v1328, 0.0
    %v2557 = vsel %vm2525, %v1329, 0.0
    %v2558 = vsel %vm2526, %v1330, 0.0
    %v2559 = vsel %vm2527, %v1331, 0.0
    %v2560 = vsel %vm2528, %v1332, 0.0
    %v2561 = vsel %vm2529, %v1333, 0.0
    %v2562 = vsel %vm1593, %v2530, -inf
    %v2563 = vsel %vm1593, %v2531, -inf
    %v2564 = vmax.f32 %v2562, %v2563
    %v2565 = vrot.slane %v2564, 4
    %v2566 = vmax.f32 %v2564, %v2565
    %v2567 = vrot.slane %v2566, 2
    %v2568 = vmax.f32 %v2566, %v2567
    %v2569 = vrot.slane %v2568, 1
    %v2570 = vmax.f32 %v2568, %v2569
    %v2571 = vsel %vm1593, %v2532, -inf
    %v2572 = vsel %vm1593, %v2533, -inf
    %v2573 = vmax.f32 %v2571, %v2572
    %v2574 = vrot.slane %v2573, 4
    %v2575 = vmax.f32 %v2573, %v2574
    %v2576 = vrot.slane %v2575, 2
    %v2577 = vmax.f32 %v2575, %v2576
    %v2578 = vrot.slane %v2577, 1
    %v2579 = vmax.f32 %v2577, %v2578
    %v2580 = vsel %vm1593, %v2534, -inf
    %v2581 = vsel %vm1593, %v2535, -inf
    %v2582 = vmax.f32 %v2580, %v2581
    %v2583 = vrot.slane %v2582, 4
    %v2584 = vmax.f32 %v2582, %v2583
    %v2585 = vrot.slane %v2584, 2
    %v2586 = vmax.f32 %v2584, %v2585
    %v2587 = vrot.slane %v2586, 1
    %v2588 = vmax.f32 %v2586, %v2587
    %v2589 = vsel %vm1593, %v2536, -inf
    %v2590 = vsel %vm1593, %v2537, -inf
    %v2591 = vmax.f32 %v2589, %v2590
    %v2592 = vrot.slane %v2591, 4
    %v2593 = vmax.f32 %v2591, %v2592
    %v2594 = vrot.slane %v2593, 2
    %v2595 = vmax.f32 %v2593, %v2594
    %v2596 = vrot.slane %v2595, 1
    %v2597 = vmax.f32 %v2595, %v2596
    %v2598 = vsel %vm1593, %v2538, -inf
    %v2599 = vsel %vm1593, %v2539, -inf
    %v2600 = vmax.f32 %v2598, %v2599
    %v2601 = vrot.slane %v2600, 4
    %v2602 = vmax.f32 %v2600, %v2601
    %v2603 = vrot.slane %v2602, 2
    %v2604 = vmax.f32 %v2602, %v2603
    %v2605 = vrot.slane %v2604, 1
    %v2606 = vmax.f32 %v2604, %v2605
    %v2607 = vsel %vm1593, %v2540, -inf
    %v2608 = vsel %vm1593, %v2541, -inf
    %v2609 = vmax.f32 %v2607, %v2608
    %v2610 = vrot.slane %v2609, 4
    %v2611 = vmax.f32 %v2609, %v2610
    %v2612 = vrot.slane %v2611, 2
    %v2613 = vmax.f32 %v2611, %v2612
    %v2614 = vrot.slane %v2613, 1
    %v2615 = vmax.f32 %v2613, %v2614
    %v2616 = vsel %vm1593, %v2542, -inf
    %v2617 = vsel %vm1593, %v2543, -inf
    %v2618 = vmax.f32 %v2616, %v2617
    %v2619 = vrot.slane %v2618, 4
    %v2620 = vmax.f32 %v2618, %v2619
    %v2621 = vrot.slane %v2620, 2
    %v2622 = vmax.f32 %v2620, %v2621
    %v2623 = vrot.slane %v2622, 1
    %v2624 = vmax.f32 %v2622, %v2623
    %v2625 = vsel %vm1593, %v2544, -inf
    %v2626 = vsel %vm1593, %v2545, -inf
    %v2627 = vmax.f32 %v2625, %v2626
    %v2628 = vrot.slane %v2627, 4
    %v2629 = vmax.f32 %v2627, %v2628
    %v2630 = vrot.slane %v2629, 2
    %v2631 = vmax.f32 %v2629, %v2630
    %v2632 = vrot.slane %v2631, 1
    %v2633 = vmax.f32 %v2631, %v2632
    %v2634 = vsel %vm1593, %v2546, -inf
    %v2635 = vsel %vm1593, %v2547, -inf
    %v2636 = vmax.f32 %v2634, %v2635
    %v2637 = vrot.slane %v2636, 4
    %v2638 = vmax.f32 %v2636, %v2637
    %v2639 = vrot.slane %v2638, 2
    %v2640 = vmax.f32 %v2638, %v2639
    %v2641 = vrot.slane %v2640, 1
    %v2642 = vmax.f32 %v2640, %v2641
    %v2643 = vsel %vm1593, %v2548, -inf
    %v2644 = vsel %vm1593, %v2549, -inf
    %v2645 = vmax.f32 %v2643, %v2644
    %v2646 = vrot.slane %v2645, 4
    %v2647 = vmax.f32 %v2645, %v2646
    %v2648 = vrot.slane %v2647, 2
    %v2649 = vmax.f32 %v2647, %v2648
    %v2650 = vrot.slane %v2649, 1
    %v2651 = vmax.f32 %v2649, %v2650
    %v2652 = vsel %vm1593, %v2550, -inf
    %v2653 = vsel %vm1593, %v2551, -inf
    %v2654 = vmax.f32 %v2652, %v2653
    %v2655 = vrot.slane %v2654, 4
    %v2656 = vmax.f32 %v2654, %v2655
    %v2657 = vrot.slane %v2656, 2
    %v2658 = vmax.f32 %v2656, %v2657
    %v2659 = vrot.slane %v2658, 1
    %v2660 = vmax.f32 %v2658, %v2659
    %v2661 = vsel %vm1593, %v2552, -inf
    %v2662 = vsel %vm1593, %v2553, -inf
    %v2663 = vmax.f32 %v2661, %v2662
    %v2664 = vrot.slane %v2663, 4
    %v2665 = vmax.f32 %v2663, %v2664
    %v2666 = vrot.slane %v2665, 2
    %v2667 = vmax.f32 %v2665, %v2666
    %v2668 = vrot.slane %v2667, 1
    %v2669 = vmax.f32 %v2667, %v2668
    %v2670 = vsel %vm1593, %v2554, -inf
    %v2671 = vsel %vm1593, %v2555, -inf
    %v2672 = vmax.f32 %v2670, %v2671
    %v2673 = vrot.slane %v2672, 4
    %v2674 = vmax.f32 %v2672, %v2673
    %v2675 = vrot.slane %v2674, 2
    %v2676 = vmax.f32 %v2674, %v2675
    %v2677 = vrot.slane %v2676, 1
    %v2678 = vmax.f32 %v2676, %v2677
    %v2679 = vsel %vm1593, %v2556, -inf
    %v2680 = vsel %vm1593, %v2557, -inf
    %v2681 = vmax.f32 %v2679, %v2680
    %v2682 = vrot.slane %v2681, 4
    %v2683 = vmax.f32 %v2681, %v2682
    %v2684 = vrot.slane %v2683, 2
    %v2685 = vmax.f32 %v2683, %v2684
    %v2686 = vrot.slane %v2685, 1
    %v2687 = vmax.f32 %v2685, %v2686
    %v2688 = vsel %vm1593, %v2558, -inf
    %v2689 = vsel %vm1593, %v2559, -inf
    %v2690 = vmax.f32 %v2688, %v2689
    %v2691 = vrot.slane %v2690, 4
    %v2692 = vmax.f32 %v2690, %v2691
    %v2693 = vrot.slane %v2692, 2
    %v2694 = vmax.f32 %v2692, %v2693
    %v2695 = vrot.slane %v2694, 1
    %v2696 = vmax.f32 %v2694, %v2695
    %v2697 = vsel %vm1593, %v2560, -inf
    %v2698 = vsel %vm1593, %v2561, -inf
    %v2699 = vmax.f32 %v2697, %v2698
    %v2700 = vrot.slane %v2699, 4
    %v2701 = vmax.f32 %v2699, %v2700
    %v2702 = vrot.slane %v2701, 2
    %v2703 = vmax.f32 %v2701, %v2702
    %v2704 = vrot.slane %v2703, 1
    %v2705 = vmax.f32 %v2703, %v2704
    %v2706 = vmax.f32 %v2570, 0.0
    %v2707 = vmax.f32 %v2579, 0.0
    %v2708 = vmax.f32 %v2588, 0.0
    %v2709 = vmax.f32 %v2597, 0.0
    %v2710 = vmax.f32 %v2606, 0.0
    %v2711 = vmax.f32 %v2615, 0.0
    %v2712 = vmax.f32 %v2624, 0.0
    %v2713 = vmax.f32 %v2633, 0.0
    %v2714 = vmax.f32 %v2642, 0.0
    %v2715 = vmax.f32 %v2651, 0.0
    %v2716 = vmax.f32 %v2660, 0.0
    %v2717 = vmax.f32 %v2669, 0.0
    %v2718 = vmax.f32 %v2678, 0.0
    %v2719 = vmax.f32 %v2687, 0.0
    %v2720 = vmax.f32 %v2696, 0.0
    %v2721 = vmax.f32 %v2705, 0.0
    %v2722 = vpack.c.bf16 %v2706, %v2706
    %v2723 = vpack.c.bf16 %v2707, %v2707
    %v2724 = vpack.c.bf16 %v2708, %v2708
    %v2725 = vpack.c.bf16 %v2709, %v2709
    %v2726 = vpack.c.bf16 %v2710, %v2710
    %v2727 = vpack.c.bf16 %v2711, %v2711
    %v2728 = vpack.c.bf16 %v2712, %v2712
    %v2729 = vpack.c.bf16 %v2713, %v2713
    %v2730 = vpack.c.bf16 %v2714, %v2714
    %v2731 = vpack.c.bf16 %v2715, %v2715
    %v2732 = vpack.c.bf16 %v2716, %v2716
    %v2733 = vpack.c.bf16 %v2717, %v2717
    %v2734 = vpack.c.bf16 %v2718, %v2718
    %v2735 = vpack.c.bf16 %v2719, %v2719
    %v2736 = vpack.c.bf16 %v2720, %v2720
    %v2737 = vpack.c.bf16 %v2721, %v2721
    %s2738 = scalar_lea.vmem %s4, 32
    %v2739 = vld [vmem:[%s2738] sm:$0xf]
    %v2740 = vld [vmem:[%s2738 + $0x4] sm:$0xf]
    %v2741 = vld [vmem:[%s2738 + $0x8] sm:$0xf]
    %v2742 = vld [vmem:[%s2738 + $0xc] sm:$0xf]
    %v2759 = vunpack.c.l.b16 %v2722
    %v2760 = vunpack.c.l.b16 %v2723
    %v2761 = vunpack.c.l.b16 %v2724
    %v2762 = vunpack.c.l.b16 %v2725
    %v2763 = vunpack.c.l.b16 %v2726
    %v2764 = vunpack.c.l.b16 %v2727
    %v2765 = vunpack.c.l.b16 %v2728
    %v2766 = vunpack.c.l.b16 %v2729
    %v2767 = vunpack.c.l.b16 %v2730
    %v2768 = vunpack.c.l.b16 %v2731
    %v2769 = vunpack.c.l.b16 %v2732
    %v2770 = vunpack.c.l.b16 %v2733
    %v2771 = vunpack.c.l.b16 %v2734
    %v2772 = vunpack.c.l.b16 %v2735
    %v2773 = vunpack.c.l.b16 %v2736
    %v2774 = vunpack.c.l.b16 %v2737
    %v2775 = vsel %vm2211, %v2760, %v2759
    %v2776 = vsel %vm2213, %v2761, %v2775
    %v2777 = vsel %vm2215, %v2762, %v2776
    %v2778 = vsel %vm2217, %v2763, %v2777
    %v2779 = vsel %vm2219, %v2764, %v2778
    %v2780 = vsel %vm2221, %v2765, %v2779
    %v2781 = vsel %vm2223, %v2766, %v2780
    %v2782 = vsel %vm2211, %v2768, %v2767
    %v2783 = vsel %vm2213, %v2769, %v2782
    %v2784 = vsel %vm2215, %v2770, %v2783
    %v2785 = vsel %vm2217, %v2771, %v2784
    %v2786 = vsel %vm2219, %v2772, %v2785
    %v2787 = vsel %vm2221, %v2773, %v2786
    %v2788 = vsel %vm2223, %v2774, %v2787
    %v2789 = vpack.c.b16 %v2788, %v2781
    %v2794 = vunpack.c.l.b16 %v2739
    %v2795 = vunpack.c.l.b16 %v2740
    %v2796 = vunpack.c.l.b16 %v2741
    %v2797 = vunpack.c.l.b16 %v2742
    %v2798 = vpack.c.b16 %v2795, %v2794
    %v2799 = vpack.c.b16 %v2797, %v2796
    %v2803 = vsel %vm1593, %v2789, 0
    %2805 = vmatpush.bf16.msra.mxu0 0
    %2806 = vmatpush.bf16.msra.mxu0 0
    %2807 = vmatpush.bf16.msra.mxu0 0
    %2808 = vmatpush.bf16.msra.mxu0 0
    %2809 = vmatpush.bf16.msra.mxu0 0
    %2810 = vmatpush.bf16.msra.mxu0 0
    %2811 = vmatpush.bf16.msra.mxu0 %v2799
    %2812 = vmatpush.bf16.msra.mxu0 %v2798
    %2813 = vmatmul.bf16.gmra.mxu0 %v2803
    %v2814 = vpop.f32.mrf.mxu0
    %v2815 = vadd.f32 0.0, %v2814
    %v2816 = vpop.f32.mrf.mxu0
    %v2817 = vadd.f32 0.0, %v2816
    %2818 = vdwg.mxu0
    %v2819 = vadd.f32 %v2334, %v2815
    %v2820 = vadd.f32 %v2336, %v2817
    %2821 = vst [vmem:[#allocation5] sm:$0xff] %v2819
    %2822 = vst [vmem:[#allocation5 + $0x8] sm:$0xff] %v2820
    // Predicated region
    $region26: #{tpu_custom_call.1} parent=1 // pred_check
      _
    $region27: #{tpu_custom_call.1} parent=1 // pred_check_branch
      %2824 = sbr.rel (0) target = $region29
    $region28: #{tpu_custom_call.1} parent=1 // pred_region
      %2826 = vsyncadd [#allocation4], 0
      %s2827 = sshll.u32 [#allocation5], 4
      %s2828 = int_to_ptr.vmem [resolvable:$true] %s2827
      %s2829 = sshll.u32 %s5, 4
      %s2830 = int_to_ptr.hbm [resolvable:$true] %s2829
      %2835 = dma.vmem_to_hbm [thread:$0]  %s2828, 256, %s2830, [#allocation4], 128, 128, 8
    $region29: #{tpu_custom_call.1} parent=1 // pred_fallthru
      _
    // Predicated region
    $region30: #{tpu_custom_call.1} parent=1 // pred_check
      _
    $region31: #{tpu_custom_call.1} parent=1 // pred_check_branch
      %2837 = sbr.rel (0) target = $region33
    $region32: #{tpu_custom_call.1} parent=1 // pred_region
      %2839 = dma.done [#allocation4], 256
    $region33: #{tpu_custom_call.1} parent=1 // pred_fallthru
      _
    %2840 = vsyncpa [#allocation3], 1
    %2841 = vsyncpa [#allocation4], 1

</llo_original>
